<compile_context>
chip_gen: v7x
topology: tpu7x:2x2x1
jax: 0.10.0
libtpu: 0.0.40
codegen_flags: <defaults>
</compile_context>

<pallas_src>
import functools

import jax
import jax.numpy as jnp
from jax.experimental import pallas as pl
from jax.experimental.pallas import tpu as pltpu


def _round_up(x, m):
    return (x + m - 1) // m * m


def _mlp_pack_layout(R, H1, H2):
    """Sublane-aligned row offsets of w1/b1/w2/b2/w3/b3 in the packed VMEM operand."""
    r_w1 = 0
    r_b1 = _round_up(r_w1 + 2 * R, 8)
    r_w2 = _round_up(r_b1 + 1, 8)
    r_b2 = _round_up(r_w2 + H1, 8)
    r_w3 = _round_up(r_b2 + 1, 8)
    r_b3 = _round_up(r_w3 + H2, 8)
    rows = _round_up(r_b3 + 1, 8)
    cols = max(H1, H2, 1)
    return r_w1, r_b1, r_w2, r_b2, r_w3, r_b3, rows, cols


def chowder_kernel(x_ref, wconv_ref, mlp_ref, out_ref, *, R, H1, H2, idx_bits):
    Bb, C, N = x_ref.shape                     # bags in this block, channels, tiles

    x = x_ref[...]                             # (Bb, C, N) f32, native NCW layout
    wc = wconv_ref[...]                        # (1, C)

    # ---- 1x1 Conv1d (C -> 1): batched MXU contraction over C, no transpose.
    # (Bb,1,C) @ (Bb,C,N) -> (Bb,1,N); N stays on the lane axis (lane-dense).
    # The conv bias is folded into fc1's bias on the host (selection is shift-invariant).
    wc_b = jnp.broadcast_to(wc.reshape(1, 1, C), (Bb, 1, C))
    agg = jnp.einsum('bkc,bcn->bkn', wc_b, x,
                     preferred_element_type=jnp.float32)[:, 0, :]          # (Bb, N)

    # ---- top-R / bottom-R via a packed monotone int32 key.
    # key = (order-preserving-int(score) with idx_bits low bits cleared) | tile_index,
    # so one max/min per step yields the value AND uniquely identifies the element to
    # mask (no second "arg-index" reduction).  Low-mantissa truncation perturbs the
    # selected scores by <= 2^idx_bits - 1 ULPs.  Assumes N >= R and no NaNs in agg
    # (same data contract as torch.topk here).
    SIGN_FLIP = jnp.int32(0x7FFFFFFF)
    bits = pltpu.bitcast(agg, jnp.int32)                                    # (Bb, N)
    skey = jnp.where(bits < 0, bits ^ SIGN_FLIP, bits)                      # monotone key
    low_mask = (1 << idx_bits) - 1
    tile_idx = jax.lax.broadcasted_iota(jnp.int32, (Bb, N), 1)
    key0 = (skey & jnp.int32(~low_mask)) | tile_idx                         # unique keys

    KEY_MIN = jnp.int32(-(2 ** 31))      # < any real key (sentinel for the max chain)
    KEY_MAX = jnp.int32(2 ** 31 - 1)     # > any real key (sentinel for the min chain)

    # Interleaved extraction: max- and min-chains are independent given `agg`, so the
    # 2R cross-lane reductions can be co-issued instead of two serial R-chains.
    cur_top = key0
    cur_bot = key0
    top_keys, bot_keys = [], []
    for _ in range(R):
        kmax = jnp.max(cur_top, axis=1, keepdims=True)    # (Bb, 1)
        kmin = jnp.min(cur_bot, axis=1, keepdims=True)    # (Bb, 1)
        top_keys.append(kmax)
        bot_keys.append(kmin)
        cur_top = jnp.where(cur_top == kmax, KEY_MIN, cur_top)
        cur_bot = jnp.where(cur_bot == kmin, KEY_MAX, cur_bot)

    keys = jnp.concatenate(top_keys + bot_keys, axis=1)   # (Bb, 2R): [top desc, bot asc]
    vbits = keys & jnp.int32(~low_mask)
    vbits = jnp.where(vbits < 0, vbits ^ SIGN_FLIP, vbits)
    mil = pltpu.bitcast(vbits, jnp.float32)                # (Bb, 2R)

    # ---- MLP head (dropout is identity in eval mode).  Params unpacked from the single
    # packed VMEM operand with sublane-aligned static slices.
    r_w1, r_b1, r_w2, r_b2, r_w3, r_b3, _, _ = _mlp_pack_layout(R, H1, H2)
    w1 = mlp_ref[r_w1:r_w1 + 2 * R, 0:H1]
    b1 = mlp_ref[r_b1:r_b1 + 1, 0:H1]
    w2 = mlp_ref[r_w2:r_w2 + H1, 0:H2]
    b2 = mlp_ref[r_b2:r_b2 + 1, 0:H2]
    w3 = mlp_ref[r_w3:r_w3 + H2, 0:1]
    b3 = mlp_ref[r_b3:r_b3 + 1, 0:1]

    h1 = jax.nn.sigmoid(jnp.dot(mil, w1, preferred_element_type=jnp.float32) + b1)
    h2 = jax.nn.sigmoid(jnp.dot(h1, w2, preferred_element_type=jnp.float32) + b2)
    o = jax.nn.sigmoid(jnp.dot(h2, w3, preferred_element_type=jnp.float32) + b3)

    out_ref[...] = o.astype(out_ref.dtype)     # (Bb, 1)


def chowder_forward(in_features_ncw, add_features, params, *, R, b_block=None):
    """in_features_ncw: (B, C, N), exactly the PyTorch Conv1d NCW input.
    add_features is unused (lymph_count=False, num_add_features=0)."""
    del add_features
    B, C, N = in_features_ncw.shape
    wconv, bconv, w1, b1, w2, b2, w3, b3 = params
    H1 = w1.shape[1]
    H2 = w2.shape[1]
    assert w1.shape[0] == 2 * R and wconv.shape == (1, C)

    # Default bag-block: big enough to fill MXU sublanes, small enough that the
    # double-buffered x block stays within a conservative VMEM budget.
    if b_block is None:
        budget = 24 * 1024 * 1024                      # bytes for the streamed x block
        per_bag = C * N * 4
        b_block = min(B, 128, max(8, budget // (2 * max(per_bag, 1))))
    b_block = min(b_block, B)
    if B % b_block != 0:
        b_block = B
    grid = (B // b_block,)

    idx_bits = max(1, int(N - 1).bit_length())

    # Fold the Conv1d bias into fc1's bias: the bias is a constant shift of every score,
    # so selection is unchanged and (sel + bconv) @ w1 + b1 == sel @ w1 + (b1 + bconv*1^T w1).
    b1_eff = b1 + bconv[0, 0] * jnp.sum(w1, axis=0, keepdims=True)

    # Pack all small MLP params into one VMEM operand (single DMA instead of six).
    r_w1, r_b1, r_w2, r_b2, r_w3, r_b3, rows, cols = _mlp_pack_layout(R, H1, H2)
    packed = jnp.zeros((rows, cols), jnp.float32)
    packed = packed.at[r_w1:r_w1 + 2 * R, 0:H1].set(w1)
    packed = packed.at[r_b1, 0:H1].set(b1_eff.reshape(H1))
    packed = packed.at[r_w2:r_w2 + H1, 0:H2].set(w2)
    packed = packed.at[r_b2, 0:H2].set(b2.reshape(H2))
    packed = packed.at[r_w3:r_w3 + H2, 0:1].set(w3)
    packed = packed.at[r_b3, 0].set(b3[0, 0])

    kernel = functools.partial(chowder_kernel, R=R, H1=H1, H2=H2, idx_bits=idx_bits)

    out = pl.pallas_call(
        kernel,
        out_shape=jax.ShapeDtypeStruct((B, 1), jnp.float32),
        grid=grid,
        in_specs=[
            pl.BlockSpec((b_block, C, N), lambda i: (i, 0, 0)),        # x, blocked over bags
            pl.BlockSpec((1, C), lambda i: (0, 0)),                    # conv weight (VMEM)
            pl.BlockSpec((rows, cols), lambda i: (0, 0)),              # packed MLP params
        ],
        out_specs=pl.BlockSpec((b_block, 1), lambda i: (i, 0)),
        compiler_params=pltpu.CompilerParams(
            dimension_semantics=("parallel",),        # bags shard across TCs (v7x megacore)
            vmem_limit_bytes=32 * 1024 * 1024,
        ),
    )(in_features_ncw, wconv, packed)

    return out.reshape(B, 1, 1)                 # matches torch output (B, 1, 1)


def chowder_reference(in_features_ncw, params, *, R):
    """Pure-JAX reference of the PyTorch forward (eval mode), full f32 precision."""
    wconv, bconv, w1, b1, w2, b2, w3, b3 = params
    hp = jax.lax.Precision.HIGHEST
    x = jnp.transpose(in_features_ncw, (0, 2, 1))             # (B, N, C)
    agg = jnp.sum(x * wconv[0], axis=-1) + bconv[0, 0]        # (B, N)
    top = jax.lax.top_k(agg, R)[0]                            # descending
    bot = -jax.lax.top_k(-agg, R)[0]                          # ascending
    mil = jnp.concatenate([top, bot], axis=1)
    h1 = jax.nn.sigmoid(jnp.dot(mil, w1, precision=hp) + b1)
    h2 = jax.nn.sigmoid(jnp.dot(h1, w2, precision=hp) + b2)
    o = jax.nn.sigmoid(jnp.dot(h2, w3, precision=hp) + b3)
    return o.reshape(-1, 1, 1)


def init_params(key, input_size, R, neurons):
    ks = jax.random.split(key, 8)
    H1, H2 = neurons
    s = 0.1
    wconv = (s * jax.random.normal(ks[0], (1, input_size))).astype(jnp.float32)
    bconv = (s * jax.random.normal(ks[1], (1, 1))).astype(jnp.float32)
    w1 = (s * jax.random.normal(ks[2], (2 * R, H1))).astype(jnp.float32)
    b1 = (s * jax.random.normal(ks[3], (1, H1))).astype(jnp.float32)
    w2 = (s * jax.random.normal(ks[4], (H1, H2))).astype(jnp.float32)
    b2 = (s * jax.random.normal(ks[5], (1, H2))).astype(jnp.float32)
    w3 = (s * jax.random.normal(ks[6], (H2, 1))).astype(jnp.float32)
    b3 = (s * jax.random.normal(ks[7], (1, 1))).astype(jnp.float32)
    return (wconv, bconv, w1, b1, w2, b2, w3, b3)


if __name__ == "__main__":
    # Small shapes consistent with the module: 16 bags (>= 8 per block so the MLP
    # matmuls fill MXU sublanes), input_size=64 channels, 32 tiles per bag,
    # R=5, neurons=[32, 16].  b_block=8 -> grid=(2,), parallel over bags.
    B, INPUT_SIZE, N_TILES = 16, 64, 32
    R = 5
    NEURONS = [32, 16]
    B_BLOCK = 8

    key = jax.random.PRNGKey(0)
    kx, kp = jax.random.split(key)
    in_features = jax.random.normal(kx, (B, INPUT_SIZE, N_TILES), dtype=jnp.float32)
    add_features = jnp.zeros((B, 1), dtype=jnp.float32)   # unused (lymph_count=False)

    params = init_params(kp, INPUT_SIZE, R, NEURONS)

    out = chowder_forward(in_features, add_features, params, R=R, b_block=B_BLOCK)
    out = jax.block_until_ready(out)

    ref = chowder_reference(in_features, params, R=R)
    assert out.shape == (B, 1, 1)
    # Tolerance allows for MXU pass rounding on the score contraction and the
    # <= 2^idx_bits ULP low-mantissa truncation from the packed top-k sort key.
    assert jnp.allclose(out, ref, rtol=1e-3, atol=1e-4), (out, ref)

    print("KERNEL_OK")
</pallas_src>

<mosaic_0001>
module attributes {stable_mosaic.version = 11 : i64} {
  func.func @chowder_kernel(%arg0: i32, %arg1: memref<8x64x32xf32, #tpu.memory_space<vmem>>, %arg2: memref<1x64xf32, #tpu.memory_space<vmem>>, %arg3: memref<88x32xf32, #tpu.memory_space<vmem>>, %arg4: memref<8x1xf32, #tpu.memory_space<vmem>>) attributes {dimension_semantics = [#tpu.dimension_semantics<parallel>], iteration_bounds = array<i64: 2>, scalar_prefetch = 0 : i64, scratch_operands = 0 : i64, tpu.core_type = #tpu.core_type<tc>, window_params = [{transform_indices = @transform_0, window_bounds = array<i64: 8, 64, 32>}, {pipeline_mode = #tpu.pipeline_mode<synchronous>, transform_indices = @transform_1, window_bounds = array<i64: 1, 64>}, {pipeline_mode = #tpu.pipeline_mode<synchronous>, transform_indices = @transform_2, window_bounds = array<i64: 88, 32>}, {transform_indices = @transform_3, window_bounds = array<i64: 8, 1>}]} {
    %c0 = arith.constant 0 : index
    %c0_0 = arith.constant 0 : index
    %c0_1 = arith.constant 0 : index
    %0 = vector.load %arg1[%c0, %c0_0, %c0_1] : memref<8x64x32xf32, #tpu.memory_space<vmem>>, vector<8x64x32xf32>
    %c0_2 = arith.constant 0 : index
    %c0_3 = arith.constant 0 : index
    %1 = vector.load %arg2[%c0_2, %c0_3] : memref<1x64xf32, #tpu.memory_space<vmem>>, vector<1x64xf32>
    %2 = vector.shape_cast %1 : vector<1x64xf32> to vector<1x1x64xf32>
    %3 = vector.shape_cast %2 : vector<1x1x64xf32> to vector<1x1x64xf32>
    %4 = vector.broadcast %3 : vector<1x1x64xf32> to vector<8x1x64xf32>
    "tpu.trace_start"() <{level = 10 : i32, message = "bkc,bcn->bkn"}> : () -> ()
    %cst = arith.constant dense<0.000000e+00> : vector<8x1x32xf32>
    %5 = tpu.matmul %4, %0, %cst {dimension_numbers = #tpu.dot_dimension_numbers<[2], [1], [1], [2], [0, 0, 0, 1, 1, 2], [0], [0]>} : vector<8x1x64xf32>, vector<8x64x32xf32>, vector<8x1x32xf32> -> vector<8x1x32xf32>
    "tpu.trace_stop"() : () -> ()
    %6 = vector.shape_cast %5 : vector<8x1x32xf32> to vector<8x32xf32>
    %7 = tpu.bitcast %6 : vector<8x32xf32> -> vector<8x32xi32>
    %c0_i32 = arith.constant 0 : i32
    %8 = vector.broadcast %c0_i32 : i32 to vector<8x32xi32>
    %9 = arith.cmpi slt, %7, %8 : vector<8x32xi32>
    %c2147483647_i32 = arith.constant 2147483647 : i32
    %10 = vector.broadcast %c2147483647_i32 : i32 to vector<8x32xi32>
    %11 = arith.xori %7, %10 : vector<8x32xi32>
    %12 = arith.select %9, %11, %7 : vector<8x32xi1>, vector<8x32xi32>
    %13 = tpu.iota {dimensions = array<i32: 1>} : vector<8x32xi32>
    %c-32_i32 = arith.constant -32 : i32
    %14 = vector.broadcast %c-32_i32 : i32 to vector<8x32xi32>
    %15 = arith.andi %12, %14 : vector<8x32xi32>
    %16 = arith.ori %15, %13 : vector<8x32xi32>
    %cst_4 = arith.constant dense<-2147483648> : vector<8xi32>
    %17 = vector.multi_reduction <maxsi>, %16, %cst_4 [1] : vector<8x32xi32> to vector<8xi32>
    %18 = vector.shape_cast %17 : vector<8xi32> to vector<8x1xi32>
    %cst_5 = arith.constant dense<2147483647> : vector<8xi32>
    %19 = vector.multi_reduction <minsi>, %16, %cst_5 [1] : vector<8x32xi32> to vector<8xi32>
    %20 = vector.shape_cast %19 : vector<8xi32> to vector<8x1xi32>
    %21 = vector.broadcast %18 : vector<8x1xi32> to vector<8x32xi32>
    %22 = arith.cmpi eq, %16, %21 : vector<8x32xi32>
    %c-2147483648_i32 = arith.constant -2147483648 : i32
    %23 = vector.broadcast %c-2147483648_i32 : i32 to vector<8x32xi32>
    %24 = arith.select %22, %23, %16 : vector<8x32xi1>, vector<8x32xi32>
    %25 = vector.broadcast %20 : vector<8x1xi32> to vector<8x32xi32>
    %26 = arith.cmpi eq, %16, %25 : vector<8x32xi32>
    %c2147483647_i32_6 = arith.constant 2147483647 : i32
    %27 = vector.broadcast %c2147483647_i32_6 : i32 to vector<8x32xi32>
    %28 = arith.select %26, %27, %16 : vector<8x32xi1>, vector<8x32xi32>
    %cst_7 = arith.constant dense<-2147483648> : vector<8xi32>
    %29 = vector.multi_reduction <maxsi>, %24, %cst_7 [1] : vector<8x32xi32> to vector<8xi32>
    %30 = vector.shape_cast %29 : vector<8xi32> to vector<8x1xi32>
    %cst_8 = arith.constant dense<2147483647> : vector<8xi32>
    %31 = vector.multi_reduction <minsi>, %28, %cst_8 [1] : vector<8x32xi32> to vector<8xi32>
    %32 = vector.shape_cast %31 : vector<8xi32> to vector<8x1xi32>
    %33 = vector.broadcast %30 : vector<8x1xi32> to vector<8x32xi32>
    %34 = arith.cmpi eq, %24, %33 : vector<8x32xi32>
    %c-2147483648_i32_9 = arith.constant -2147483648 : i32
    %35 = vector.broadcast %c-2147483648_i32_9 : i32 to vector<8x32xi32>
    %36 = arith.select %34, %35, %24 : vector<8x32xi1>, vector<8x32xi32>
    %37 = vector.broadcast %32 : vector<8x1xi32> to vector<8x32xi32>
    %38 = arith.cmpi eq, %28, %37 : vector<8x32xi32>
    %c2147483647_i32_10 = arith.constant 2147483647 : i32
    %39 = vector.broadcast %c2147483647_i32_10 : i32 to vector<8x32xi32>
    %40 = arith.select %38, %39, %28 : vector<8x32xi1>, vector<8x32xi32>
    %cst_11 = arith.constant dense<-2147483648> : vector<8xi32>
    %41 = vector.multi_reduction <maxsi>, %36, %cst_11 [1] : vector<8x32xi32> to vector<8xi32>
    %42 = vector.shape_cast %41 : vector<8xi32> to vector<8x1xi32>
    %cst_12 = arith.constant dense<2147483647> : vector<8xi32>
    %43 = vector.multi_reduction <minsi>, %40, %cst_12 [1] : vector<8x32xi32> to vector<8xi32>
    %44 = vector.shape_cast %43 : vector<8xi32> to vector<8x1xi32>
    %45 = vector.broadcast %42 : vector<8x1xi32> to vector<8x32xi32>
    %46 = arith.cmpi eq, %36, %45 : vector<8x32xi32>
    %c-2147483648_i32_13 = arith.constant -2147483648 : i32
    %47 = vector.broadcast %c-2147483648_i32_13 : i32 to vector<8x32xi32>
    %48 = arith.select %46, %47, %36 : vector<8x32xi1>, vector<8x32xi32>
    %49 = vector.broadcast %44 : vector<8x1xi32> to vector<8x32xi32>
    %50 = arith.cmpi eq, %40, %49 : vector<8x32xi32>
    %c2147483647_i32_14 = arith.constant 2147483647 : i32
    %51 = vector.broadcast %c2147483647_i32_14 : i32 to vector<8x32xi32>
    %52 = arith.select %50, %51, %40 : vector<8x32xi1>, vector<8x32xi32>
    %cst_15 = arith.constant dense<-2147483648> : vector<8xi32>
    %53 = vector.multi_reduction <maxsi>, %48, %cst_15 [1] : vector<8x32xi32> to vector<8xi32>
    %54 = vector.shape_cast %53 : vector<8xi32> to vector<8x1xi32>
    %cst_16 = arith.constant dense<2147483647> : vector<8xi32>
    %55 = vector.multi_reduction <minsi>, %52, %cst_16 [1] : vector<8x32xi32> to vector<8xi32>
    %56 = vector.shape_cast %55 : vector<8xi32> to vector<8x1xi32>
    %57 = vector.broadcast %54 : vector<8x1xi32> to vector<8x32xi32>
    %58 = arith.cmpi eq, %48, %57 : vector<8x32xi32>
    %c-2147483648_i32_17 = arith.constant -2147483648 : i32
    %59 = vector.broadcast %c-2147483648_i32_17 : i32 to vector<8x32xi32>
    %60 = arith.select %58, %59, %48 : vector<8x32xi1>, vector<8x32xi32>
    %61 = vector.broadcast %56 : vector<8x1xi32> to vector<8x32xi32>
    %62 = arith.cmpi eq, %52, %61 : vector<8x32xi32>
    %c2147483647_i32_18 = arith.constant 2147483647 : i32
    %63 = vector.broadcast %c2147483647_i32_18 : i32 to vector<8x32xi32>
    %64 = arith.select %62, %63, %52 : vector<8x32xi1>, vector<8x32xi32>
    %cst_19 = arith.constant dense<-2147483648> : vector<8xi32>
    %65 = vector.multi_reduction <maxsi>, %60, %cst_19 [1] : vector<8x32xi32> to vector<8xi32>
    %66 = vector.shape_cast %65 : vector<8xi32> to vector<8x1xi32>
    %cst_20 = arith.constant dense<2147483647> : vector<8xi32>
    %67 = vector.multi_reduction <minsi>, %64, %cst_20 [1] : vector<8x32xi32> to vector<8xi32>
    %68 = vector.shape_cast %67 : vector<8xi32> to vector<8x1xi32>
    %69 = tpu.concatenate %18, %30, %42, %54, %66, %20, %32, %44, %56, %68 in 1 : vector<8x1xi32>, vector<8x1xi32>, vector<8x1xi32>, vector<8x1xi32>, vector<8x1xi32>, vector<8x1xi32>, vector<8x1xi32>, vector<8x1xi32>, vector<8x1xi32>, vector<8x1xi32> -> vector<8x10xi32>
    %c-32_i32_21 = arith.constant -32 : i32
    %70 = vector.broadcast %c-32_i32_21 : i32 to vector<8x10xi32>
    %71 = arith.andi %69, %70 : vector<8x10xi32>
    %c0_i32_22 = arith.constant 0 : i32
    %72 = vector.broadcast %c0_i32_22 : i32 to vector<8x10xi32>
    %73 = arith.cmpi slt, %71, %72 : vector<8x10xi32>
    %c2147483647_i32_23 = arith.constant 2147483647 : i32
    %74 = vector.broadcast %c2147483647_i32_23 : i32 to vector<8x10xi32>
    %75 = arith.xori %71, %74 : vector<8x10xi32>
    %76 = arith.select %73, %75, %71 : vector<8x10xi1>, vector<8x10xi32>
    %77 = tpu.bitcast %76 : vector<8x10xi32> -> vector<8x10xf32>
    %c0_24 = arith.constant 0 : index
    %c0_25 = arith.constant 0 : index
    %78 = vector.load %arg3[%c0_24, %c0_25] : memref<88x32xf32, #tpu.memory_space<vmem>>, vector<10x32xf32>
    %c16 = arith.constant 16 : index
    %c0_26 = arith.constant 0 : index
    %79 = vector.load %arg3[%c16, %c0_26] : memref<88x32xf32, #tpu.memory_space<vmem>>, vector<1x32xf32>
    %c24 = arith.constant 24 : index
    %c0_27 = arith.constant 0 : index
    %80 = vector.load %arg3[%c24, %c0_27] : memref<88x32xf32, #tpu.memory_space<vmem>>, vector<32x16xf32>
    %c56 = arith.constant 56 : index
    %c0_28 = arith.constant 0 : index
    %81 = vector.load %arg3[%c56, %c0_28] : memref<88x32xf32, #tpu.memory_space<vmem>>, vector<1x16xf32>
    %c64 = arith.constant 64 : index
    %c0_29 = arith.constant 0 : index
    %82 = vector.load %arg3[%c64, %c0_29] : memref<88x32xf32, #tpu.memory_space<vmem>>, vector<16x1xf32>
    %c80 = arith.constant 80 : index
    %c0_30 = arith.constant 0 : index
    %83 = vector.load %arg3[%c80, %c0_30] : memref<88x32xf32, #tpu.memory_space<vmem>>, vector<1x1xf32>
    %cst_31 = arith.constant dense<0.000000e+00> : vector<8x32xf32>
    %84 = tpu.matmul %77, %78, %cst_31 {dimension_numbers = #tpu.dot_dimension_numbers<[1], [0], [0], [1], [0, 0, 1, 1], [], []>} : vector<8x10xf32>, vector<10x32xf32>, vector<8x32xf32> -> vector<8x32xf32>
    %85 = vector.broadcast %79 : vector<1x32xf32> to vector<8x32xf32>
    %86 = arith.addf %84, %85 : vector<8x32xf32>
    %87 = arith.negf %86 : vector<8x32xf32>
    %88 = math.exp %87 : vector<8x32xf32>
    %cst_32 = arith.constant 1.000000e+00 : f32
    %89 = vector.broadcast %cst_32 : f32 to vector<8x32xf32>
    %90 = arith.addf %89, %88 : vector<8x32xf32>
    %91 = arith.divf %89, %90 : vector<8x32xf32>
    %cst_33 = arith.constant dense<0.000000e+00> : vector<8x16xf32>
    %92 = tpu.matmul %91, %80, %cst_33 {dimension_numbers = #tpu.dot_dimension_numbers<[1], [0], [0], [1], [0, 0, 1, 1], [], []>} : vector<8x32xf32>, vector<32x16xf32>, vector<8x16xf32> -> vector<8x16xf32>
    %93 = vector.broadcast %81 : vector<1x16xf32> to vector<8x16xf32>
    %94 = arith.addf %92, %93 : vector<8x16xf32>
    %95 = arith.negf %94 : vector<8x16xf32>
    %96 = math.exp %95 : vector<8x16xf32>
    %cst_34 = arith.constant 1.000000e+00 : f32
    %97 = vector.broadcast %cst_34 : f32 to vector<8x16xf32>
    %98 = arith.addf %97, %96 : vector<8x16xf32>
    %99 = arith.divf %97, %98 : vector<8x16xf32>
    %cst_35 = arith.constant dense<0.000000e+00> : vector<8x1xf32>
    %100 = tpu.matmul %99, %82, %cst_35 {dimension_numbers = #tpu.dot_dimension_numbers<[1], [0], [0], [1], [0, 0, 1, 1], [], []>} : vector<8x16xf32>, vector<16x1xf32>, vector<8x1xf32> -> vector<8x1xf32>
    %101 = vector.broadcast %83 : vector<1x1xf32> to vector<8x1xf32>
    %102 = arith.addf %100, %101 : vector<8x1xf32>
    %103 = arith.negf %102 : vector<8x1xf32>
    %104 = math.exp %103 : vector<8x1xf32>
    %cst_36 = arith.constant 1.000000e+00 : f32
    %105 = vector.broadcast %cst_36 : f32 to vector<8x1xf32>
    %106 = arith.addf %105, %104 : vector<8x1xf32>
    %107 = arith.divf %105, %106 : vector<8x1xf32>
    %c0_37 = arith.constant 0 : index
    %c0_38 = arith.constant 0 : index
    %108 = vector.load %arg4[%c0_37, %c0_38] : memref<8x1xf32, #tpu.memory_space<vmem>>, vector<8x1xf32>
    tpu.vector_store %arg4[%c0_37, %c0_38], %107 {strides = array<i32>} : memref<8x1xf32, #tpu.memory_space<vmem>>, vector<8x1xf32>,
    return
  }
  func.func @transform_0(%arg0: i32) -> (i32, i32, i32) {
    %c0_i32 = arith.constant 0 : i32
    %c0_i32_0 = arith.constant 0 : i32
    %c0_i32_1 = arith.constant 0 : i32
    return %arg0, %c0_i32, %c0_i32_0 : i32, i32, i32
  }
  func.func @transform_1(%arg0: i32) -> (i32, i32) {
    %c0_i32 = arith.constant 0 : i32
    %c0_i32_0 = arith.constant 0 : i32
    %c0_i32_1 = arith.constant 0 : i32
    return %c0_i32, %c0_i32_0 : i32, i32
  }
  func.func @transform_2(%arg0: i32) -> (i32, i32) {
    %c0_i32 = arith.constant 0 : i32
    %c0_i32_0 = arith.constant 0 : i32
    %c0_i32_1 = arith.constant 0 : i32
    return %c0_i32, %c0_i32_0 : i32, i32
  }
  func.func @transform_3(%arg0: i32) -> (i32, i32) {
    %c0_i32 = arith.constant 0 : i32
    %c0_i32_0 = arith.constant 0 : i32
    return %arg0, %c0_i32 : i32, i32
  }
}

</mosaic_0001>

<llo_original>
// kernel: tpu_custom_call.1
$region0: #{tpu_custom_call.1}
  #allocation0 [shape = 'u32[]', space=smem, size = 0x4, offset = 0x4, fixed_abs, tag = 'smem constant byte address 0x4 - core index']
  #allocation1 [shape = 'u32[144,128]{1,0:T(1,128)}', space=vmem, size = 0x12000, scoped, tag = 'internal scratch']
  %s0 = inlined_call_operand.vmem [shape: f32[16,64,32], index: 0, kind: input, shape index: {}]
  %s1 = inlined_call_operand.vmem [shape: f32[1,64], index: 1, kind: input, shape index: {}]
  %s2 = inlined_call_operand.vmem [shape: f32[88,32], index: 2, kind: input, shape index: {}]
  %s3 = inlined_call_operand.vmem [shape: f32[16,1], index: 3, kind: output, shape index: {}]
  %s4 = sld [smem:[#allocation0]]
  $region45: #{tpu_custom_call.1} parent=0
    _
  %s6 = ssub.s32 1, %s4
  %s7 = scalar_select 0, %s6, %s4
  loop: start=0, step=1, limit=4
  $region2: #{tpu_custom_call.1} parent=0 // loop_pre_header
    _
  $region3: #{tpu_custom_call.1} parent=0 // loop_header
    %s9 = sphi 0, %s13
    %p10 = scmp.ge.s32.totalorder %s9, 4
    %s19 = sphi 0, %s21
    %s22 = sphi 0, %s19
    %s23 = sphi 0, %s22
    %s39 = sphi 0, %s23
    %s43 = sphi 0, %s43
    %s45 = sphi 0, %s43
    %s46 = sphi 0, %s45
    %s60 = sphi 0, %s46
    %s64 = sphi 0, %s64
    %s66 = sphi 0, %s64
    %s67 = sphi 0, %s66
    %s81 = sphi 0, %s67
    %s87 = sphi 0, %s89
    %s90 = sphi 0, %s87
    %s91 = sphi 0, %s90
    %s107 = sphi 0, %s91
  $region4: #{tpu_custom_call.1} parent=0 // loop_header_branch
    %12 = sbr.rel (%p10) target = $region8
  $region5: #{tpu_custom_call.1} parent=0 // loop_body
    %s14 = ssub.s32 %s9, 1
    %s15 = ssub.s32 %s9, 2
    %s16 = sadd.s32 %s9, 1
    %s17 = ssub.s32 %s9, %s16
    %p18 = scmp.eq.s32.totalorder %s17, 0
    %s20 = sadd.s32 %s19, 1
    %s21 = scalar_select %p18, %s19, %s20
    %p24 = pneg %p18
    %p25 = scmp.eq.s32.totalorder %s9, 1
    %p26 = por %p24, %p25
    %p27 = scmp.ne.s32.totalorder %s19, %s22
    %p28 = scmp.eq.s32.totalorder %s9, 0
    %p29 = por %p27, %p28
    %p30 = scmp.ne.s32.totalorder %s19, %s22
    %p31 = scmp.eq.s32.totalorder %s14, 1
    %p32 = por %p30, %p31
    %p33 = scmp.ne.s32.totalorder %s22, %s23
    %p34 = scmp.eq.s32.totalorder %s14, 0
    %p35 = por %p33, %p34
    %p36 = scmp.ne.s32.totalorder %s22, %s23
    %p37 = scmp.eq.s32.totalorder %s15, 1
    %p38 = por %p36, %p37
    %p40 = scmp.ne.s32.totalorder %s23, %s39
    %p41 = scmp.eq.s32.totalorder %s15, 0
    %p42 = por %p40, %p41
    %s44 = sadd.s32 %s43, 1
    %p47 = scmp.eq.s32.totalorder %s9, 1
    %p48 = scmp.ne.s32.totalorder %s43, %s45
    %p49 = scmp.eq.s32.totalorder %s9, 0
    %p50 = por %p48, %p49
    %p51 = scmp.ne.s32.totalorder %s43, %s45
    %p52 = scmp.eq.s32.totalorder %s14, 1
    %p53 = por %p51, %p52
    %p54 = scmp.ne.s32.totalorder %s45, %s46
    %p55 = scmp.eq.s32.totalorder %s14, 0
    %p56 = por %p54, %p55
    %p57 = scmp.ne.s32.totalorder %s45, %s46
    %p58 = scmp.eq.s32.totalorder %s15, 1
    %p59 = por %p57, %p58
    %p61 = scmp.ne.s32.totalorder %s46, %s60
    %p62 = scmp.eq.s32.totalorder %s15, 0
    %p63 = por %p61, %p62
    %s65 = sadd.s32 %s64, 1
    %p68 = scmp.eq.s32.totalorder %s9, 1
    %p69 = scmp.ne.s32.totalorder %s64, %s66
    %p70 = scmp.eq.s32.totalorder %s9, 0
    %p71 = por %p69, %p70
    %p72 = scmp.ne.s32.totalorder %s64, %s66
    %p73 = scmp.eq.s32.totalorder %s14, 1
    %p74 = por %p72, %p73
    %p75 = scmp.ne.s32.totalorder %s66, %s67
    %p76 = scmp.eq.s32.totalorder %s14, 0
    %p77 = por %p75, %p76
    %p78 = scmp.ne.s32.totalorder %s66, %s67
    %p79 = scmp.eq.s32.totalorder %s15, 1
    %p80 = por %p78, %p79
    %p82 = scmp.ne.s32.totalorder %s67, %s81
    %p83 = scmp.eq.s32.totalorder %s15, 0
    %p84 = por %p82, %p83
    %s85 = ssub.s32 %s9, %s16
    %p86 = scmp.eq.s32.totalorder %s85, 0
    %s88 = sadd.s32 %s87, 1
    %s89 = scalar_select %p86, %s87, %s88
    %p92 = pneg %p86
    %p93 = scmp.eq.s32.totalorder %s9, 1
    %p94 = por %p92, %p93
    %p95 = scmp.ne.s32.totalorder %s87, %s90
    %p96 = scmp.eq.s32.totalorder %s9, 0
    %p97 = por %p95, %p96
    %p98 = scmp.ne.s32.totalorder %s87, %s90
    %p99 = scmp.eq.s32.totalorder %s14, 1
    %p100 = por %p98, %p99
    %p101 = scmp.ne.s32.totalorder %s90, %s91
    %p102 = scmp.eq.s32.totalorder %s14, 0
    %p103 = por %p101, %p102
    %p104 = scmp.ne.s32.totalorder %s90, %s91
    %p105 = scmp.eq.s32.totalorder %s15, 1
    %p106 = por %p104, %p105
    %p108 = scmp.ne.s32.totalorder %s91, %s107
    %p109 = scmp.eq.s32.totalorder %s15, 0
    %p110 = por %p108, %p109
    %p111 = scmp.le.s32.totalorder 1, %s9
    %p112 = scmp.lt.s32.totalorder %s9, 3
    %p113 = pnand %p111, %p112
    %p114 = pneg %p113
    // Predicated region
    $region9: #{tpu_custom_call.1} parent=5 // pred_check
      _
    $region10: #{tpu_custom_call.1} parent=5 // pred_check_branch
      %116 = sbr.rel (%p113) target = $region12
    $region11: #{tpu_custom_call.1} parent=5 // pred_region
      %s117 = ssub.s32 %s9, 1
      // Predicated region
      $region13: #{tpu_custom_call.1} parent=11 // pred_check
        %p118 = pneg %p56
      $region14: #{tpu_custom_call.1} parent=11 // pred_check_branch
        %120 = sbr.rel (%p118) target = $region16
      $region15: #{tpu_custom_call.1} parent=11 // pred_region
        _
      $region16: #{tpu_custom_call.1} parent=11 // pred_fallthru
        _
      // Predicated region
      $region17: #{tpu_custom_call.1} parent=11 // pred_check
        %p121 = pneg %p77
      $region18: #{tpu_custom_call.1} parent=11 // pred_check_branch
        %123 = sbr.rel (%p121) target = $region20
      $region19: #{tpu_custom_call.1} parent=11 // pred_region
        _
      $region20: #{tpu_custom_call.1} parent=11 // pred_fallthru
        _
    $region12: #{tpu_custom_call.1} parent=5 // pred_fallthru
      _
    %p124 = scmp.lt.s32.totalorder %s9, 2
    // Predicated region
    $region21: #{tpu_custom_call.1} parent=5 // pred_check
      %p125 = pneg %p124
    $region22: #{tpu_custom_call.1} parent=5 // pred_check_branch
      %127 = sbr.rel (%p125) target = $region24
    $region23: #{tpu_custom_call.1} parent=5 // pred_region
      // Predicated region
      $region25: #{tpu_custom_call.1} parent=23 // pred_check
        %p128 = pneg %p29
      $region26: #{tpu_custom_call.1} parent=23 // pred_check_branch
        %130 = sbr.rel (%p128) target = $region28
      $region27: #{tpu_custom_call.1} parent=23 // pred_region
        %s131 = smul.u32 8, %s9
        %p132 = scmp.lt.s32.totalorder %s131, 15
        %s133 = scalar_select %p132, %s131, 15
        %s134 = smul.addr %s133, 8
        %s135 = smul.addr %s134, 8
        %s136 = scalar_lea.vmem %s0, %s135
        %s137 = smul.u32 8, %s9
      $region28: #{tpu_custom_call.1} parent=23 // pred_fallthru
        _
    $region24: #{tpu_custom_call.1} parent=5 // pred_fallthru
      _
    %p138 = scmp.le.s32.totalorder 1, %s9
    %p139 = scmp.lt.s32.totalorder %s9, 3
    %p140 = pnand %p138, %p139
    %p141 = pneg %p140
    // Predicated region
    $region29: #{tpu_custom_call.1} parent=5 // pred_check
      _
    $region30: #{tpu_custom_call.1} parent=5 // pred_check_branch
      %143 = sbr.rel (%p140) target = $region32
    $region31: #{tpu_custom_call.1} parent=5 // pred_region
      %s144 = ssub.s32 %s9, 1
      %s145 = smul.u32 8, %s14
      %p146 = scmp.lt.s32.totalorder %s145, 15
      %s147 = scalar_select %p146, %s145, 15
      %s148 = smul.addr %s147, 8
      %s149 = smul.addr %s148, 8
      %s150 = scalar_lea.vmem %s0, %s149
      %p151 = pneg %p35
      %p152 = pneg %p32
      %p153 = pneg %p56
      %p154 = pneg %p53
      %p155 = pneg %p77
      %p156 = pneg %p74
      %p157 = pneg %p103
      %p158 = pneg %p100
      %p159 = scmp.lt.s32.totalorder %s14, 1
      %s160 = scalar_select %p159, %s14, 1
      %s161 = smul.addr %s160, 8
      %s162 = scalar_lea.vmem %s3, %s161
      %s163 = smul.u32 8, %s14
      %p164 = scmp.lt.s32.totalorder %s163, 15
      %s165 = scalar_select %p164, %s163, 15
      %s166 = smul.addr %s165, 8
      %s167 = smul.addr %s166, 8
      %s168 = scalar_lea.vmem %s0, %s167
      %s169 = smul.u32 8, %s14
      %p170 = scmp.lt.s32.totalorder %s14, 1
      %s171 = scalar_select %p170, %s14, 1
      %s172 = smul.addr %s171, 8
      %s173 = scalar_lea.vmem %s3, %s172
      %v174 = vld [vmem:[%s168] sm:$0xff]
      %v175 = vld [vmem:[%s168 + $0x8] sm:$0xff]
      %v176 = vld [vmem:[%s168 + $0x10] sm:$0xff]
      %v177 = vld [vmem:[%s168 + $0x18] sm:$0xff]
      %v178 = vld [vmem:[%s168 + $0x20] sm:$0xff]
      %v179 = vld [vmem:[%s168 + $0x28] sm:$0xff]
      %v180 = vld [vmem:[%s168 + $0x30] sm:$0xff]
      %v181 = vld [vmem:[%s168 + $0x38] sm:$0xff]
      %v182 = vld [vmem:[%s168 + $0x40] sm:$0xff]
      %v183 = vld [vmem:[%s168 + $0x48] sm:$0xff]
      %v184 = vld [vmem:[%s168 + $0x50] sm:$0xff]
      %v185 = vld [vmem:[%s168 + $0x58] sm:$0xff]
      %v186 = vld [vmem:[%s168 + $0x60] sm:$0xff]
      %v187 = vld [vmem:[%s168 + $0x68] sm:$0xff]
      %v188 = vld [vmem:[%s168 + $0x70] sm:$0xff]
      %v189 = vld [vmem:[%s168 + $0x78] sm:$0xff]
      %v190 = vld [vmem:[%s168 + $0x80] sm:$0xff]
      %v191 = vld [vmem:[%s168 + $0x88] sm:$0xff]
      %v192 = vld [vmem:[%s168 + $0x90] sm:$0xff]
      %v193 = vld [vmem:[%s168 + $0x98] sm:$0xff]
      %v194 = vld [vmem:[%s168 + $0xa0] sm:$0xff]
      %v195 = vld [vmem:[%s168 + $0xa8] sm:$0xff]
      %v196 = vld [vmem:[%s168 + $0xb0] sm:$0xff]
      %v197 = vld [vmem:[%s168 + $0xb8] sm:$0xff]
      %v198 = vld [vmem:[%s168 + $0xc0] sm:$0xff]
      %v199 = vld [vmem:[%s168 + $0xc8] sm:$0xff]
      %v200 = vld [vmem:[%s168 + $0xd0] sm:$0xff]
      %v201 = vld [vmem:[%s168 + $0xd8] sm:$0xff]
      %v202 = vld [vmem:[%s168 + $0xe0] sm:$0xff]
      %v203 = vld [vmem:[%s168 + $0xe8] sm:$0xff]
      %v204 = vld [vmem:[%s168 + $0xf0] sm:$0xff]
      %v205 = vld [vmem:[%s168 + $0xf8] sm:$0xff]
      %v206 = vld [vmem:[%s168 + $0x100] sm:$0xff]
      %v207 = vld [vmem:[%s168 + $0x108] sm:$0xff]
      %v208 = vld [vmem:[%s168 + $0x110] sm:$0xff]
      %v209 = vld [vmem:[%s168 + $0x118] sm:$0xff]
      %v210 = vld [vmem:[%s168 + $0x120] sm:$0xff]
      %v211 = vld [vmem:[%s168 + $0x128] sm:$0xff]
      %v212 = vld [vmem:[%s168 + $0x130] sm:$0xff]
      %v213 = vld [vmem:[%s168 + $0x138] sm:$0xff]
      %v214 = vld [vmem:[%s168 + $0x140] sm:$0xff]
      %v215 = vld [vmem:[%s168 + $0x148] sm:$0xff]
      %v216 = vld [vmem:[%s168 + $0x150] sm:$0xff]
      %v217 = vld [vmem:[%s168 + $0x158] sm:$0xff]
      %v218 = vld [vmem:[%s168 + $0x160] sm:$0xff]
      %v219 = vld [vmem:[%s168 + $0x168] sm:$0xff]
      %v220 = vld [vmem:[%s168 + $0x170] sm:$0xff]
      %v221 = vld [vmem:[%s168 + $0x178] sm:$0xff]
      %v222 = vld [vmem:[%s168 + $0x180] sm:$0xff]
      %v223 = vld [vmem:[%s168 + $0x188] sm:$0xff]
      %v224 = vld [vmem:[%s168 + $0x190] sm:$0xff]
      %v225 = vld [vmem:[%s168 + $0x198] sm:$0xff]
      %v226 = vld [vmem:[%s168 + $0x1a0] sm:$0xff]
      %v227 = vld [vmem:[%s168 + $0x1a8] sm:$0xff]
      %v228 = vld [vmem:[%s168 + $0x1b0] sm:$0xff]
      %v229 = vld [vmem:[%s168 + $0x1b8] sm:$0xff]
      %v230 = vld [vmem:[%s168 + $0x1c0] sm:$0xff]
      %v231 = vld [vmem:[%s168 + $0x1c8] sm:$0xff]
      %v232 = vld [vmem:[%s168 + $0x1d0] sm:$0xff]
      %v233 = vld [vmem:[%s168 + $0x1d8] sm:$0xff]
      %v234 = vld [vmem:[%s168 + $0x1e0] sm:$0xff]
      %v235 = vld [vmem:[%s168 + $0x1e8] sm:$0xff]
      %v236 = vld [vmem:[%s168 + $0x1f0] sm:$0xff]
      %v237 = vld [vmem:[%s168 + $0x1f8] sm:$0xff]
      %v238 = vld [vmem:[%s1] sm:$0x1]
      %vm239 = vcmask 523264
      %v241 = vsel %vm239, %v238, 0
      %243 = vmatprep.subr.mxu0 0.0
      %244 = vmatpush1.msra.mxu0 %v174
      %245 = vmatprep.subr.mxu0 0.0
      %246 = vmatpush1.msra.mxu0 %v175
      %247 = vmatprep.subr.mxu0 0.0
      %248 = vmatpush1.msra.mxu0 %v176
      %249 = vmatprep.subr.mxu0 0.0
      %250 = vmatpush1.msra.mxu0 %v177
      %251 = vmatprep.subr.mxu0 0.0
      %252 = vmatpush1.msra.mxu0 %v178
      %253 = vmatprep.subr.mxu0 0.0
      %254 = vmatpush1.msra.mxu0 %v179
      %255 = vmatprep.subr.mxu0 0.0
      %256 = vmatpush1.msra.mxu0 %v180
      %257 = vmatprep.subr.mxu0 0.0
      %258 = vmatpush1.msra.mxu0 %v181
      %259 = vmatprep.subr.mxu0 0.0
      %260 = vmatpush1.msra.mxu0 0.0
      %261 = vmatprep.subr.mxu0 0.0
      %262 = vmatpush1.msra.mxu0 0.0
      %263 = vmatprep.subr.mxu0 0.0
      %264 = vmatpush1.msra.mxu0 0.0
      %265 = vmatprep.subr.mxu0 0.0
      %266 = vmatpush1.msra.mxu0 0.0
      %267 = vmatprep.subr.mxu0 0.0
      %268 = vmatpush1.msra.mxu0 0.0
      %269 = vmatprep.subr.mxu0 0.0
      %270 = vmatpush1.msra.mxu0 0.0
      %271 = vmatprep.subr.mxu0 0.0
      %272 = vmatpush1.msra.mxu0 0.0
      %273 = vmatprep.subr.mxu0 0.0
      %274 = vmatpush1.msra.mxu0 0.0
      %275 = vmatprep.subr.mxu0 0.0
      %276 = vmatpush1.msra.mxu0 0.0
      %277 = vmatprep.subr.mxu0 0.0
      %278 = vmatpush1.msra.mxu0 0.0
      %279 = vmatprep.subr.mxu0 0.0
      %280 = vmatpush1.msra.mxu0 0.0
      %281 = vmatprep.subr.mxu0 0.0
      %282 = vmatpush1.msra.mxu0 0.0
      %283 = vmatprep.subr.mxu0 0.0
      %284 = vmatpush1.msra.mxu0 0.0
      %285 = vmatprep.subr.mxu0 0.0
      %286 = vmatpush1.msra.mxu0 0.0
      %287 = vmatprep.subr.mxu0 0.0
      %288 = vmatpush1.msra.mxu0 0.0
      %289 = vmatprep.subr.mxu0 0.0
      %290 = vmatpush1.msra.mxu0 0.0
      %291 = vmatprep.subr.mxu0 0.0
      %292 = vmatpush1.msra.mxu0 0.0
      %293 = vmatprep.subr.mxu0 0.0
      %294 = vmatpush1.msra.mxu0 0.0
      %295 = vmatprep.subr.mxu0 0.0
      %296 = vmatpush1.msra.mxu0 0.0
      %297 = vmatprep.subr.mxu0 0.0
      %298 = vmatpush1.msra.mxu0 0.0
      %299 = vmatprep.subr.mxu0 0.0
      %300 = vmatpush1.msra.mxu0 0.0
      %301 = vmatprep.subr.mxu0 0.0
      %302 = vmatpush1.msra.mxu0 0.0
      %303 = vmatprep.subr.mxu0 0.0
      %304 = vmatpush1.msra.mxu0 0.0
      %305 = vmatprep.subr.mxu0 0.0
      %306 = vmatpush1.msra.mxu0 0.0
      %307 = vmatprep.mubr.f32.mxu0 0.0
      %308 = vmatmul.mubr.f32.gmra.mrb[0].mxu0 %v241
      %v309 = vpop.f32.mrb[0].mxu0
      %v310 = vadd.f32 0.0, %v309
      %v311 = vpop.f32.mrb[0].mxu0
      %312 = vdwg.mxu0
      %313 = vmatprep.subr.mxu0 0.0
      %314 = vmatpush1.msra.mxu0 %v182
      %315 = vmatprep.subr.mxu0 0.0
      %316 = vmatpush1.msra.mxu0 %v183
      %317 = vmatprep.subr.mxu0 0.0
      %318 = vmatpush1.msra.mxu0 %v184
      %319 = vmatprep.subr.mxu0 0.0
      %320 = vmatpush1.msra.mxu0 %v185
      %321 = vmatprep.subr.mxu0 0.0
      %322 = vmatpush1.msra.mxu0 %v186
      %323 = vmatprep.subr.mxu0 0.0
      %324 = vmatpush1.msra.mxu0 %v187
      %325 = vmatprep.subr.mxu0 0.0
      %326 = vmatpush1.msra.mxu0 %v188
      %327 = vmatprep.subr.mxu0 0.0
      %328 = vmatpush1.msra.mxu0 %v189
      %329 = vmatprep.subr.mxu0 0.0
      %330 = vmatpush1.msra.mxu0 0.0
      %331 = vmatprep.subr.mxu0 0.0
      %332 = vmatpush1.msra.mxu0 0.0
      %333 = vmatprep.subr.mxu0 0.0
      %334 = vmatpush1.msra.mxu0 0.0
      %335 = vmatprep.subr.mxu0 0.0
      %336 = vmatpush1.msra.mxu0 0.0
      %337 = vmatprep.subr.mxu0 0.0
      %338 = vmatpush1.msra.mxu0 0.0
      %339 = vmatprep.subr.mxu0 0.0
      %340 = vmatpush1.msra.mxu0 0.0
      %341 = vmatprep.subr.mxu0 0.0
      %342 = vmatpush1.msra.mxu0 0.0
      %343 = vmatprep.subr.mxu0 0.0
      %344 = vmatpush1.msra.mxu0 0.0
      %345 = vmatprep.subr.mxu0 0.0
      %346 = vmatpush1.msra.mxu0 0.0
      %347 = vmatprep.subr.mxu0 0.0
      %348 = vmatpush1.msra.mxu0 0.0
      %349 = vmatprep.subr.mxu0 0.0
      %350 = vmatpush1.msra.mxu0 0.0
      %351 = vmatprep.subr.mxu0 0.0
      %352 = vmatpush1.msra.mxu0 0.0
      %353 = vmatprep.subr.mxu0 0.0
      %354 = vmatpush1.msra.mxu0 0.0
      %355 = vmatprep.subr.mxu0 0.0
      %356 = vmatpush1.msra.mxu0 0.0
      %357 = vmatprep.subr.mxu0 0.0
      %358 = vmatpush1.msra.mxu0 0.0
      %359 = vmatprep.subr.mxu0 0.0
      %360 = vmatpush1.msra.mxu0 0.0
      %361 = vmatprep.subr.mxu0 0.0
      %362 = vmatpush1.msra.mxu0 0.0
      %363 = vmatprep.subr.mxu0 0.0
      %364 = vmatpush1.msra.mxu0 0.0
      %365 = vmatprep.subr.mxu0 0.0
      %366 = vmatpush1.msra.mxu0 0.0
      %367 = vmatprep.subr.mxu0 0.0
      %368 = vmatpush1.msra.mxu0 0.0
      %369 = vmatprep.subr.mxu0 0.0
      %370 = vmatpush1.msra.mxu0 0.0
      %371 = vmatprep.subr.mxu0 0.0
      %372 = vmatpush1.msra.mxu0 0.0
      %373 = vmatprep.subr.mxu0 0.0
      %374 = vmatpush1.msra.mxu0 0.0
      %375 = vmatprep.subr.mxu0 0.0
      %376 = vmatpush1.msra.mxu0 0.0
      %377 = vmatprep.mubr.f32.mxu0 0.0
      %378 = vmatmul.mubr.f32.gmra.mrb[0].mxu0 %v241
      %v379 = vpop.f32.mrb[0].mxu0
      %v380 = vadd.f32 0.0, %v379
      %v381 = vpop.f32.mrb[0].mxu0
      %382 = vdwg.mxu0
      %383 = vmatprep.subr.mxu0 0.0
      %384 = vmatpush1.msra.mxu0 %v190
      %385 = vmatprep.subr.mxu0 0.0
      %386 = vmatpush1.msra.mxu0 %v191
      %387 = vmatprep.subr.mxu0 0.0
      %388 = vmatpush1.msra.mxu0 %v192
      %389 = vmatprep.subr.mxu0 0.0
      %390 = vmatpush1.msra.mxu0 %v193
      %391 = vmatprep.subr.mxu0 0.0
      %392 = vmatpush1.msra.mxu0 %v194
      %393 = vmatprep.subr.mxu0 0.0
      %394 = vmatpush1.msra.mxu0 %v195
      %395 = vmatprep.subr.mxu0 0.0
      %396 = vmatpush1.msra.mxu0 %v196
      %397 = vmatprep.subr.mxu0 0.0
      %398 = vmatpush1.msra.mxu0 %v197
      %399 = vmatprep.subr.mxu0 0.0
      %400 = vmatpush1.msra.mxu0 0.0
      %401 = vmatprep.subr.mxu0 0.0
      %402 = vmatpush1.msra.mxu0 0.0
      %403 = vmatprep.subr.mxu0 0.0
      %404 = vmatpush1.msra.mxu0 0.0
      %405 = vmatprep.subr.mxu0 0.0
      %406 = vmatpush1.msra.mxu0 0.0
      %407 = vmatprep.subr.mxu0 0.0
      %408 = vmatpush1.msra.mxu0 0.0
      %409 = vmatprep.subr.mxu0 0.0
      %410 = vmatpush1.msra.mxu0 0.0
      %411 = vmatprep.subr.mxu0 0.0
      %412 = vmatpush1.msra.mxu0 0.0
      %413 = vmatprep.subr.mxu0 0.0
      %414 = vmatpush1.msra.mxu0 0.0
      %415 = vmatprep.subr.mxu0 0.0
      %416 = vmatpush1.msra.mxu0 0.0
      %417 = vmatprep.subr.mxu0 0.0
      %418 = vmatpush1.msra.mxu0 0.0
      %419 = vmatprep.subr.mxu0 0.0
      %420 = vmatpush1.msra.mxu0 0.0
      %421 = vmatprep.subr.mxu0 0.0
      %422 = vmatpush1.msra.mxu0 0.0
      %423 = vmatprep.subr.mxu0 0.0
      %424 = vmatpush1.msra.mxu0 0.0
      %425 = vmatprep.subr.mxu0 0.0
      %426 = vmatpush1.msra.mxu0 0.0
      %427 = vmatprep.subr.mxu0 0.0
      %428 = vmatpush1.msra.mxu0 0.0
      %429 = vmatprep.subr.mxu0 0.0
      %430 = vmatpush1.msra.mxu0 0.0
      %431 = vmatprep.subr.mxu0 0.0
      %432 = vmatpush1.msra.mxu0 0.0
      %433 = vmatprep.subr.mxu0 0.0
      %434 = vmatpush1.msra.mxu0 0.0
      %435 = vmatprep.subr.mxu0 0.0
      %436 = vmatpush1.msra.mxu0 0.0
      %437 = vmatprep.subr.mxu0 0.0
      %438 = vmatpush1.msra.mxu0 0.0
      %439 = vmatprep.subr.mxu0 0.0
      %440 = vmatpush1.msra.mxu0 0.0
      %441 = vmatprep.subr.mxu0 0.0
      %442 = vmatpush1.msra.mxu0 0.0
      %443 = vmatprep.subr.mxu0 0.0
      %444 = vmatpush1.msra.mxu0 0.0
      %445 = vmatprep.subr.mxu0 0.0
      %446 = vmatpush1.msra.mxu0 0.0
      %447 = vmatprep.mubr.f32.mxu0 0.0
      %448 = vmatmul.mubr.f32.gmra.mrb[0].mxu0 %v241
      %v449 = vpop.f32.mrb[0].mxu0
      %v450 = vadd.f32 0.0, %v449
      %v451 = vpop.f32.mrb[0].mxu0
      %452 = vdwg.mxu0
      %453 = vmatprep.subr.mxu0 0.0
      %454 = vmatpush1.msra.mxu0 %v198
      %455 = vmatprep.subr.mxu0 0.0
      %456 = vmatpush1.msra.mxu0 %v199
      %457 = vmatprep.subr.mxu0 0.0
      %458 = vmatpush1.msra.mxu0 %v200
      %459 = vmatprep.subr.mxu0 0.0
      %460 = vmatpush1.msra.mxu0 %v201
      %461 = vmatprep.subr.mxu0 0.0
      %462 = vmatpush1.msra.mxu0 %v202
      %463 = vmatprep.subr.mxu0 0.0
      %464 = vmatpush1.msra.mxu0 %v203
      %465 = vmatprep.subr.mxu0 0.0
      %466 = vmatpush1.msra.mxu0 %v204
      %467 = vmatprep.subr.mxu0 0.0
      %468 = vmatpush1.msra.mxu0 %v205
      %469 = vmatprep.subr.mxu0 0.0
      %470 = vmatpush1.msra.mxu0 0.0
      %471 = vmatprep.subr.mxu0 0.0
      %472 = vmatpush1.msra.mxu0 0.0
      %473 = vmatprep.subr.mxu0 0.0
      %474 = vmatpush1.msra.mxu0 0.0
      %475 = vmatprep.subr.mxu0 0.0
      %476 = vmatpush1.msra.mxu0 0.0
      %477 = vmatprep.subr.mxu0 0.0
      %478 = vmatpush1.msra.mxu0 0.0
      %479 = vmatprep.subr.mxu0 0.0
      %480 = vmatpush1.msra.mxu0 0.0
      %481 = vmatprep.subr.mxu0 0.0
      %482 = vmatpush1.msra.mxu0 0.0
      %483 = vmatprep.subr.mxu0 0.0
      %484 = vmatpush1.msra.mxu0 0.0
      %485 = vmatprep.subr.mxu0 0.0
      %486 = vmatpush1.msra.mxu0 0.0
      %487 = vmatprep.subr.mxu0 0.0
      %488 = vmatpush1.msra.mxu0 0.0
      %489 = vmatprep.subr.mxu0 0.0
      %490 = vmatpush1.msra.mxu0 0.0
      %491 = vmatprep.subr.mxu0 0.0
      %492 = vmatpush1.msra.mxu0 0.0
      %493 = vmatprep.subr.mxu0 0.0
      %494 = vmatpush1.msra.mxu0 0.0
      %495 = vmatprep.subr.mxu0 0.0
      %496 = vmatpush1.msra.mxu0 0.0
      %497 = vmatprep.subr.mxu0 0.0
      %498 = vmatpush1.msra.mxu0 0.0
      %499 = vmatprep.subr.mxu0 0.0
      %500 = vmatpush1.msra.mxu0 0.0
      %501 = vmatprep.subr.mxu0 0.0
      %502 = vmatpush1.msra.mxu0 0.0
      %503 = vmatprep.subr.mxu0 0.0
      %504 = vmatpush1.msra.mxu0 0.0
      %505 = vmatprep.subr.mxu0 0.0
      %506 = vmatpush1.msra.mxu0 0.0
      %507 = vmatprep.subr.mxu0 0.0
      %508 = vmatpush1.msra.mxu0 0.0
      %509 = vmatprep.subr.mxu0 0.0
      %510 = vmatpush1.msra.mxu0 0.0
      %511 = vmatprep.subr.mxu0 0.0
      %512 = vmatpush1.msra.mxu0 0.0
      %513 = vmatprep.subr.mxu0 0.0
      %514 = vmatpush1.msra.mxu0 0.0
      %515 = vmatprep.subr.mxu0 0.0
      %516 = vmatpush1.msra.mxu0 0.0
      %517 = vmatprep.mubr.f32.mxu0 0.0
      %518 = vmatmul.mubr.f32.gmra.mrb[0].mxu0 %v241
      %v519 = vpop.f32.mrb[0].mxu0
      %v520 = vadd.f32 0.0, %v519
      %v521 = vpop.f32.mrb[0].mxu0
      %522 = vdwg.mxu0
      %523 = vmatprep.subr.mxu0 0.0
      %524 = vmatpush1.msra.mxu0 %v206
      %525 = vmatprep.subr.mxu0 0.0
      %526 = vmatpush1.msra.mxu0 %v207
      %527 = vmatprep.subr.mxu0 0.0
      %528 = vmatpush1.msra.mxu0 %v208
      %529 = vmatprep.subr.mxu0 0.0
      %530 = vmatpush1.msra.mxu0 %v209
      %531 = vmatprep.subr.mxu0 0.0
      %532 = vmatpush1.msra.mxu0 %v210
      %533 = vmatprep.subr.mxu0 0.0
      %534 = vmatpush1.msra.mxu0 %v211
      %535 = vmatprep.subr.mxu0 0.0
      %536 = vmatpush1.msra.mxu0 %v212
      %537 = vmatprep.subr.mxu0 0.0
      %538 = vmatpush1.msra.mxu0 %v213
      %539 = vmatprep.subr.mxu0 0.0
      %540 = vmatpush1.msra.mxu0 0.0
      %541 = vmatprep.subr.mxu0 0.0
      %542 = vmatpush1.msra.mxu0 0.0
      %543 = vmatprep.subr.mxu0 0.0
      %544 = vmatpush1.msra.mxu0 0.0
      %545 = vmatprep.subr.mxu0 0.0
      %546 = vmatpush1.msra.mxu0 0.0
      %547 = vmatprep.subr.mxu0 0.0
      %548 = vmatpush1.msra.mxu0 0.0
      %549 = vmatprep.subr.mxu0 0.0
      %550 = vmatpush1.msra.mxu0 0.0
      %551 = vmatprep.subr.mxu0 0.0
      %552 = vmatpush1.msra.mxu0 0.0
      %553 = vmatprep.subr.mxu0 0.0
      %554 = vmatpush1.msra.mxu0 0.0
      %555 = vmatprep.subr.mxu0 0.0
      %556 = vmatpush1.msra.mxu0 0.0
      %557 = vmatprep.subr.mxu0 0.0
      %558 = vmatpush1.msra.mxu0 0.0
      %559 = vmatprep.subr.mxu0 0.0
      %560 = vmatpush1.msra.mxu0 0.0
      %561 = vmatprep.subr.mxu0 0.0
      %562 = vmatpush1.msra.mxu0 0.0
      %563 = vmatprep.subr.mxu0 0.0
      %564 = vmatpush1.msra.mxu0 0.0
      %565 = vmatprep.subr.mxu0 0.0
      %566 = vmatpush1.msra.mxu0 0.0
      %567 = vmatprep.subr.mxu0 0.0
      %568 = vmatpush1.msra.mxu0 0.0
      %569 = vmatprep.subr.mxu0 0.0
      %570 = vmatpush1.msra.mxu0 0.0
      %571 = vmatprep.subr.mxu0 0.0
      %572 = vmatpush1.msra.mxu0 0.0
      %573 = vmatprep.subr.mxu0 0.0
      %574 = vmatpush1.msra.mxu0 0.0
      %575 = vmatprep.subr.mxu0 0.0
      %576 = vmatpush1.msra.mxu0 0.0
      %577 = vmatprep.subr.mxu0 0.0
      %578 = vmatpush1.msra.mxu0 0.0
      %579 = vmatprep.subr.mxu0 0.0
      %580 = vmatpush1.msra.mxu0 0.0
      %581 = vmatprep.subr.mxu0 0.0
      %582 = vmatpush1.msra.mxu0 0.0
      %583 = vmatprep.subr.mxu0 0.0
      %584 = vmatpush1.msra.mxu0 0.0
      %585 = vmatprep.subr.mxu0 0.0
      %586 = vmatpush1.msra.mxu0 0.0
      %587 = vmatprep.mubr.f32.mxu0 0.0
      %588 = vmatmul.mubr.f32.gmra.mrb[0].mxu0 %v241
      %v589 = vpop.f32.mrb[0].mxu0
      %v590 = vadd.f32 0.0, %v589
      %v591 = vpop.f32.mrb[0].mxu0
      %592 = vdwg.mxu0
      %593 = vmatprep.subr.mxu0 0.0
      %594 = vmatpush1.msra.mxu0 %v214
      %595 = vmatprep.subr.mxu0 0.0
      %596 = vmatpush1.msra.mxu0 %v215
      %597 = vmatprep.subr.mxu0 0.0
      %598 = vmatpush1.msra.mxu0 %v216
      %599 = vmatprep.subr.mxu0 0.0
      %600 = vmatpush1.msra.mxu0 %v217
      %601 = vmatprep.subr.mxu0 0.0
      %602 = vmatpush1.msra.mxu0 %v218
      %603 = vmatprep.subr.mxu0 0.0
      %604 = vmatpush1.msra.mxu0 %v219
      %605 = vmatprep.subr.mxu0 0.0
      %606 = vmatpush1.msra.mxu0 %v220
      %607 = vmatprep.subr.mxu0 0.0
      %608 = vmatpush1.msra.mxu0 %v221
      %609 = vmatprep.subr.mxu0 0.0
      %610 = vmatpush1.msra.mxu0 0.0
      %611 = vmatprep.subr.mxu0 0.0
      %612 = vmatpush1.msra.mxu0 0.0
      %613 = vmatprep.subr.mxu0 0.0
      %614 = vmatpush1.msra.mxu0 0.0
      %615 = vmatprep.subr.mxu0 0.0
      %616 = vmatpush1.msra.mxu0 0.0
      %617 = vmatprep.subr.mxu0 0.0
      %618 = vmatpush1.msra.mxu0 0.0
      %619 = vmatprep.subr.mxu0 0.0
      %620 = vmatpush1.msra.mxu0 0.0
      %621 = vmatprep.subr.mxu0 0.0
      %622 = vmatpush1.msra.mxu0 0.0
      %623 = vmatprep.subr.mxu0 0.0
      %624 = vmatpush1.msra.mxu0 0.0
      %625 = vmatprep.subr.mxu0 0.0
      %626 = vmatpush1.msra.mxu0 0.0
      %627 = vmatprep.subr.mxu0 0.0
      %628 = vmatpush1.msra.mxu0 0.0
      %629 = vmatprep.subr.mxu0 0.0
      %630 = vmatpush1.msra.mxu0 0.0
      %631 = vmatprep.subr.mxu0 0.0
      %632 = vmatpush1.msra.mxu0 0.0
      %633 = vmatprep.subr.mxu0 0.0
      %634 = vmatpush1.msra.mxu0 0.0
      %635 = vmatprep.subr.mxu0 0.0
      %636 = vmatpush1.msra.mxu0 0.0
      %637 = vmatprep.subr.mxu0 0.0
      %638 = vmatpush1.msra.mxu0 0.0
      %639 = vmatprep.subr.mxu0 0.0
      %640 = vmatpush1.msra.mxu0 0.0
      %641 = vmatprep.subr.mxu0 0.0
      %642 = vmatpush1.msra.mxu0 0.0
      %643 = vmatprep.subr.mxu0 0.0
      %644 = vmatpush1.msra.mxu0 0.0
      %645 = vmatprep.subr.mxu0 0.0
      %646 = vmatpush1.msra.mxu0 0.0
      %647 = vmatprep.subr.mxu0 0.0
      %648 = vmatpush1.msra.mxu0 0.0
      %649 = vmatprep.subr.mxu0 0.0
      %650 = vmatpush1.msra.mxu0 0.0
      %651 = vmatprep.subr.mxu0 0.0
      %652 = vmatpush1.msra.mxu0 0.0
      %653 = vmatprep.subr.mxu0 0.0
      %654 = vmatpush1.msra.mxu0 0.0
      %655 = vmatprep.subr.mxu0 0.0
      %656 = vmatpush1.msra.mxu0 0.0
      %657 = vmatprep.mubr.f32.mxu0 0.0
      %658 = vmatmul.mubr.f32.gmra.mrb[0].mxu0 %v241
      %v659 = vpop.f32.mrb[0].mxu0
      %v660 = vadd.f32 0.0, %v659
      %v661 = vpop.f32.mrb[0].mxu0
      %662 = vdwg.mxu0
      %663 = vmatprep.subr.mxu0 0.0
      %664 = vmatpush1.msra.mxu0 %v222
      %665 = vmatprep.subr.mxu0 0.0
      %666 = vmatpush1.msra.mxu0 %v223
      %667 = vmatprep.subr.mxu0 0.0
      %668 = vmatpush1.msra.mxu0 %v224
      %669 = vmatprep.subr.mxu0 0.0
      %670 = vmatpush1.msra.mxu0 %v225
      %671 = vmatprep.subr.mxu0 0.0
      %672 = vmatpush1.msra.mxu0 %v226
      %673 = vmatprep.subr.mxu0 0.0
      %674 = vmatpush1.msra.mxu0 %v227
      %675 = vmatprep.subr.mxu0 0.0
      %676 = vmatpush1.msra.mxu0 %v228
      %677 = vmatprep.subr.mxu0 0.0
      %678 = vmatpush1.msra.mxu0 %v229
      %679 = vmatprep.subr.mxu0 0.0
      %680 = vmatpush1.msra.mxu0 0.0
      %681 = vmatprep.subr.mxu0 0.0
      %682 = vmatpush1.msra.mxu0 0.0
      %683 = vmatprep.subr.mxu0 0.0
      %684 = vmatpush1.msra.mxu0 0.0
      %685 = vmatprep.subr.mxu0 0.0
      %686 = vmatpush1.msra.mxu0 0.0
      %687 = vmatprep.subr.mxu0 0.0
      %688 = vmatpush1.msra.mxu0 0.0
      %689 = vmatprep.subr.mxu0 0.0
      %690 = vmatpush1.msra.mxu0 0.0
      %691 = vmatprep.subr.mxu0 0.0
      %692 = vmatpush1.msra.mxu0 0.0
      %693 = vmatprep.subr.mxu0 0.0
      %694 = vmatpush1.msra.mxu0 0.0
      %695 = vmatprep.subr.mxu0 0.0
      %696 = vmatpush1.msra.mxu0 0.0
      %697 = vmatprep.subr.mxu0 0.0
      %698 = vmatpush1.msra.mxu0 0.0
      %699 = vmatprep.subr.mxu0 0.0
      %700 = vmatpush1.msra.mxu0 0.0
      %701 = vmatprep.subr.mxu0 0.0
      %702 = vmatpush1.msra.mxu0 0.0
      %703 = vmatprep.subr.mxu0 0.0
      %704 = vmatpush1.msra.mxu0 0.0
      %705 = vmatprep.subr.mxu0 0.0
      %706 = vmatpush1.msra.mxu0 0.0
      %707 = vmatprep.subr.mxu0 0.0
      %708 = vmatpush1.msra.mxu0 0.0
      %709 = vmatprep.subr.mxu0 0.0
      %710 = vmatpush1.msra.mxu0 0.0
      %711 = vmatprep.subr.mxu0 0.0
      %712 = vmatpush1.msra.mxu0 0.0
      %713 = vmatprep.subr.mxu0 0.0
      %714 = vmatpush1.msra.mxu0 0.0
      %715 = vmatprep.subr.mxu0 0.0
      %716 = vmatpush1.msra.mxu0 0.0
      %717 = vmatprep.subr.mxu0 0.0
      %718 = vmatpush1.msra.mxu0 0.0
      %719 = vmatprep.subr.mxu0 0.0
      %720 = vmatpush1.msra.mxu0 0.0
      %721 = vmatprep.subr.mxu0 0.0
      %722 = vmatpush1.msra.mxu0 0.0
      %723 = vmatprep.subr.mxu0 0.0
      %724 = vmatpush1.msra.mxu0 0.0
      %725 = vmatprep.subr.mxu0 0.0
      %726 = vmatpush1.msra.mxu0 0.0
      %727 = vmatprep.mubr.f32.mxu0 0.0
      %728 = vmatmul.mubr.f32.gmra.mrb[0].mxu0 %v241
      %v729 = vpop.f32.mrb[0].mxu0
      %v730 = vadd.f32 0.0, %v729
      %v731 = vpop.f32.mrb[0].mxu0
      %732 = vdwg.mxu0
      %733 = vmatprep.subr.mxu0 0.0
      %734 = vmatpush1.msra.mxu0 %v230
      %735 = vmatprep.subr.mxu0 0.0
      %736 = vmatpush1.msra.mxu0 %v231
      %737 = vmatprep.subr.mxu0 0.0
      %738 = vmatpush1.msra.mxu0 %v232
      %739 = vmatprep.subr.mxu0 0.0
      %740 = vmatpush1.msra.mxu0 %v233
      %741 = vmatprep.subr.mxu0 0.0
      %742 = vmatpush1.msra.mxu0 %v234
      %743 = vmatprep.subr.mxu0 0.0
      %744 = vmatpush1.msra.mxu0 %v235
      %745 = vmatprep.subr.mxu0 0.0
      %746 = vmatpush1.msra.mxu0 %v236
      %747 = vmatprep.subr.mxu0 0.0
      %748 = vmatpush1.msra.mxu0 %v237
      %749 = vmatprep.subr.mxu0 0.0
      %750 = vmatpush1.msra.mxu0 0.0
      %751 = vmatprep.subr.mxu0 0.0
      %752 = vmatpush1.msra.mxu0 0.0
      %753 = vmatprep.subr.mxu0 0.0
      %754 = vmatpush1.msra.mxu0 0.0
      %755 = vmatprep.subr.mxu0 0.0
      %756 = vmatpush1.msra.mxu0 0.0
      %757 = vmatprep.subr.mxu0 0.0
      %758 = vmatpush1.msra.mxu0 0.0
      %759 = vmatprep.subr.mxu0 0.0
      %760 = vmatpush1.msra.mxu0 0.0
      %761 = vmatprep.subr.mxu0 0.0
      %762 = vmatpush1.msra.mxu0 0.0
      %763 = vmatprep.subr.mxu0 0.0
      %764 = vmatpush1.msra.mxu0 0.0
      %765 = vmatprep.subr.mxu0 0.0
      %766 = vmatpush1.msra.mxu0 0.0
      %767 = vmatprep.subr.mxu0 0.0
      %768 = vmatpush1.msra.mxu0 0.0
      %769 = vmatprep.subr.mxu0 0.0
      %770 = vmatpush1.msra.mxu0 0.0
      %771 = vmatprep.subr.mxu0 0.0
      %772 = vmatpush1.msra.mxu0 0.0
      %773 = vmatprep.subr.mxu0 0.0
      %774 = vmatpush1.msra.mxu0 0.0
      %775 = vmatprep.subr.mxu0 0.0
      %776 = vmatpush1.msra.mxu0 0.0
      %777 = vmatprep.subr.mxu0 0.0
      %778 = vmatpush1.msra.mxu0 0.0
      %779 = vmatprep.subr.mxu0 0.0
      %780 = vmatpush1.msra.mxu0 0.0
      %781 = vmatprep.subr.mxu0 0.0
      %782 = vmatpush1.msra.mxu0 0.0
      %783 = vmatprep.subr.mxu0 0.0
      %784 = vmatpush1.msra.mxu0 0.0
      %785 = vmatprep.subr.mxu0 0.0
      %786 = vmatpush1.msra.mxu0 0.0
      %787 = vmatprep.subr.mxu0 0.0
      %788 = vmatpush1.msra.mxu0 0.0
      %789 = vmatprep.subr.mxu0 0.0
      %790 = vmatpush1.msra.mxu0 0.0
      %791 = vmatprep.subr.mxu0 0.0
      %792 = vmatpush1.msra.mxu0 0.0
      %793 = vmatprep.subr.mxu0 0.0
      %794 = vmatpush1.msra.mxu0 0.0
      %795 = vmatprep.subr.mxu0 0.0
      %796 = vmatpush1.msra.mxu0 0.0
      %797 = vmatprep.mubr.f32.mxu0 0.0
      %798 = vmatmul.mubr.f32.gmra.mrb[0].mxu0 %v241
      %v799 = vpop.f32.mrb[0].mxu0
      %v800 = vadd.f32 0.0, %v799
      %v801 = vpop.f32.mrb[0].mxu0
      %802 = vdwg.mxu0
      %vm811 = vcmp.lt.s32.totalorder %v310, 0
      %vm812 = vcmp.lt.s32.totalorder %v380, 0
      %vm813 = vcmp.lt.s32.totalorder %v450, 0
      %vm814 = vcmp.lt.s32.totalorder %v520, 0
      %vm815 = vcmp.lt.s32.totalorder %v590, 0
      %vm816 = vcmp.lt.s32.totalorder %v660, 0
      %vm817 = vcmp.lt.s32.totalorder %v730, 0
      %vm818 = vcmp.lt.s32.totalorder %v800, 0
      %v819 = vxor.u32 %v310, 2147483647
      %v820 = vxor.u32 %v380, 2147483647
      %v821 = vxor.u32 %v450, 2147483647
      %v822 = vxor.u32 %v520, 2147483647
      %v823 = vxor.u32 %v590, 2147483647
      %v824 = vxor.u32 %v660, 2147483647
      %v825 = vxor.u32 %v730, 2147483647
      %v826 = vxor.u32 %v800, 2147483647
      %v827 = vsel %vm811, %v819, %v310
      %v828 = vsel %vm812, %v820, %v380
      %v829 = vsel %vm813, %v821, %v450
      %v830 = vsel %vm814, %v822, %v520
      %v831 = vsel %vm815, %v823, %v590
      %v832 = vsel %vm816, %v824, %v660
      %v833 = vsel %vm817, %v825, %v730
      %v834 = vsel %vm818, %v826, %v800
      %v835 = vlaneseq
      %v836 = vand.u32 %v835, 127
      %v837 = vand.u32 %v827, 4294967264
      %v838 = vand.u32 %v828, 4294967264
      %v839 = vand.u32 %v829, 4294967264
      %v840 = vand.u32 %v830, 4294967264
      %v841 = vand.u32 %v831, 4294967264
      %v842 = vand.u32 %v832, 4294967264
      %v843 = vand.u32 %v833, 4294967264
      %v844 = vand.u32 %v834, 4294967264
      %v845 = vor.u32 %v837, %v836
      %v846 = vor.u32 %v838, %v836
      %v847 = vor.u32 %v839, %v836
      %v848 = vor.u32 %v840, %v836
      %v849 = vor.u32 %v841, %v836
      %v850 = vor.u32 %v842, %v836
      %v851 = vor.u32 %v843, %v836
      %v852 = vor.u32 %v844, %v836
      %v853 = vrot.slane %v846, 7
      %vm854 = vcmask 1041409
      %v855 = vsel %vm854, %v853, %v845
      %v856 = vrot.slane %v847, 6
      %vm857 = vcmask 1042434
      %v858 = vsel %vm857, %v856, %v855
      %v859 = vrot.slane %v848, 5
      %vm860 = vcmask 1043459
      %v861 = vsel %vm860, %v859, %v858
      %v862 = vrot.slane %v849, 4
      %vm863 = vcmask 1044484
      %v864 = vsel %vm863, %v862, %v861
      %v865 = vrot.slane %v850, 3
      %vm866 = vcmask 1045509
      %v867 = vsel %vm866, %v865, %v864
      %v868 = vrot.slane %v851, 2
      %vm869 = vcmask 1046534
      %v870 = vsel %vm869, %v868, %v867
      %v871 = vrot.slane %v852, 1
      %vm872 = vcmask 1047559
      %v873 = vsel %vm872, %v871, %v870
      %vm874 = vcmask 261120
      %v875 = vsel %vm874, %v873, 2147483648
      %v876 = vand.u32 %v875, 65535
      %v877 = vshra.s32 %v875, 16
      %v878 = vcvt.s32.f32 %v876
      %v879 = vcvt.s32.f32 %v877
      %880 = vmax.xlane.f32.xlu0 %v879
      %v881 = vpop.xlane.xlu0 %880
      %vm882 = vcmp.eq.f32.partialorder %v879, %v881
      %v883 = vsel %vm882, %v878, -inf
      %884 = vmax.xlane.f32.xlu0 %v883
      %v885 = vpop.xlane.xlu0 %884
      %v886 = vcvt.f32.s32 %v885
      %v887 = vcvt.f32.s32 %v881
      %v888 = vshll.u32 %v887, 16
      %v889 = vadd.s32 %v888, %v886
      %v890 = vsel %vm874, %v873, 2147483647
      %v891 = vand.u32 %v890, 65535
      %v892 = vshra.s32 %v890, 16
      %v893 = vcvt.s32.f32 %v891
      %v894 = vcvt.s32.f32 %v892
      %895 = vmin.xlane.f32.xlu0 %v894
      %v896 = vpop.xlane.xlu0 %895
      %vm897 = vcmp.eq.f32.partialorder %v894, %v896
      %v898 = vsel %vm897, %v893, inf
      %899 = vmin.xlane.f32.xlu0 %v898
      %v900 = vpop.xlane.xlu0 %899
      %v901 = vcvt.f32.s32 %v900
      %v902 = vcvt.f32.s32 %v896
      %v903 = vshll.u32 %v902, 16
      %v904 = vadd.s32 %v903, %v901
      %v905 = vrot.slane %v889, 1
      %v906 = vrot.slane %v889, 2
      %v907 = vrot.slane %v889, 3
      %v908 = vrot.slane %v889, 4
      %v909 = vrot.slane %v889, 5
      %v910 = vrot.slane %v889, 6
      %v911 = vrot.slane %v889, 7
      %vm912 = vcmp.eq.s32.totalorder %v845, %v889
      %vm913 = vcmp.eq.s32.totalorder %v846, %v905
      %vm914 = vcmp.eq.s32.totalorder %v847, %v906
      %vm915 = vcmp.eq.s32.totalorder %v848, %v907
      %vm916 = vcmp.eq.s32.totalorder %v849, %v908
      %vm917 = vcmp.eq.s32.totalorder %v850, %v909
      %vm918 = vcmp.eq.s32.totalorder %v851, %v910
      %vm919 = vcmp.eq.s32.totalorder %v852, %v911
      %v920 = vsel %vm912, 2147483648, %v845
      %v921 = vsel %vm913, 2147483648, %v846
      %v922 = vsel %vm914, 2147483648, %v847
      %v923 = vsel %vm915, 2147483648, %v848
      %v924 = vsel %vm916, 2147483648, %v849
      %v925 = vsel %vm917, 2147483648, %v850
      %v926 = vsel %vm918, 2147483648, %v851
      %v927 = vsel %vm919, 2147483648, %v852
      %v928 = vrot.slane %v904, 1
      %v929 = vrot.slane %v904, 2
      %v930 = vrot.slane %v904, 3
      %v931 = vrot.slane %v904, 4
      %v932 = vrot.slane %v904, 5
      %v933 = vrot.slane %v904, 6
      %v934 = vrot.slane %v904, 7
      %vm935 = vcmp.eq.s32.totalorder %v845, %v904
      %vm936 = vcmp.eq.s32.totalorder %v846, %v928
      %vm937 = vcmp.eq.s32.totalorder %v847, %v929
      %vm938 = vcmp.eq.s32.totalorder %v848, %v930
      %vm939 = vcmp.eq.s32.totalorder %v849, %v931
      %vm940 = vcmp.eq.s32.totalorder %v850, %v932
      %vm941 = vcmp.eq.s32.totalorder %v851, %v933
      %vm942 = vcmp.eq.s32.totalorder %v852, %v934
      %v943 = vsel %vm935, 2147483647, %v845
      %v944 = vsel %vm936, 2147483647, %v846
      %v945 = vsel %vm937, 2147483647, %v847
      %v946 = vsel %vm938, 2147483647, %v848
      %v947 = vsel %vm939, 2147483647, %v849
      %v948 = vsel %vm940, 2147483647, %v850
      %v949 = vsel %vm941, 2147483647, %v851
      %v950 = vsel %vm942, 2147483647, %v852
      %v951 = vrot.slane %v921, 7
      %v952 = vsel %vm854, %v951, %v920
      %v953 = vrot.slane %v922, 6
      %v954 = vsel %vm857, %v953, %v952
      %v955 = vrot.slane %v923, 5
      %v956 = vsel %vm860, %v955, %v954
      %v957 = vrot.slane %v924, 4
      %v958 = vsel %vm863, %v957, %v956
      %v959 = vrot.slane %v925, 3
      %v960 = vsel %vm866, %v959, %v958
      %v961 = vrot.slane %v926, 2
      %v962 = vsel %vm869, %v961, %v960
      %v963 = vrot.slane %v927, 1
      %v964 = vsel %vm872, %v963, %v962
      %v965 = vsel %vm874, %v964, 2147483648
      %v966 = vand.u32 %v965, 65535
      %v967 = vshra.s32 %v965, 16
      %v968 = vcvt.s32.f32 %v966
      %v969 = vcvt.s32.f32 %v967
      %970 = vmax.xlane.f32.xlu0 %v969
      %v971 = vpop.xlane.xlu0 %970
      %vm972 = vcmp.eq.f32.partialorder %v969, %v971
      %v973 = vsel %vm972, %v968, -inf
      %974 = vmax.xlane.f32.xlu0 %v973
      %v975 = vpop.xlane.xlu0 %974
      %v976 = vcvt.f32.s32 %v975
      %v977 = vcvt.f32.s32 %v971
      %v978 = vshll.u32 %v977, 16
      %v979 = vadd.s32 %v978, %v976
      %v980 = vrot.slane %v944, 7
      %v981 = vsel %vm854, %v980, %v943
      %v982 = vrot.slane %v945, 6
      %v983 = vsel %vm857, %v982, %v981
      %v984 = vrot.slane %v946, 5
      %v985 = vsel %vm860, %v984, %v983
      %v986 = vrot.slane %v947, 4
      %v987 = vsel %vm863, %v986, %v985
      %v988 = vrot.slane %v948, 3
      %v989 = vsel %vm866, %v988, %v987
      %v990 = vrot.slane %v949, 2
      %v991 = vsel %vm869, %v990, %v989
      %v992 = vrot.slane %v950, 1
      %v993 = vsel %vm872, %v992, %v991
      %v994 = vsel %vm874, %v993, 2147483647
      %v995 = vand.u32 %v994, 65535
      %v996 = vshra.s32 %v994, 16
      %v997 = vcvt.s32.f32 %v995
      %v998 = vcvt.s32.f32 %v996
      %999 = vmin.xlane.f32.xlu0 %v998
      %v1000 = vpop.xlane.xlu0 %999
      %vm1001 = vcmp.eq.f32.partialorder %v998, %v1000
      %v1002 = vsel %vm1001, %v997, inf
      %1003 = vmin.xlane.f32.xlu0 %v1002
      %v1004 = vpop.xlane.xlu0 %1003
      %v1005 = vcvt.f32.s32 %v1004
      %v1006 = vcvt.f32.s32 %v1000
      %v1007 = vshll.u32 %v1006, 16
      %v1008 = vadd.s32 %v1007, %v1005
      %v1009 = vrot.slane %v979, 1
      %v1010 = vrot.slane %v979, 2
      %v1011 = vrot.slane %v979, 3
      %v1012 = vrot.slane %v979, 4
      %v1013 = vrot.slane %v979, 5
      %v1014 = vrot.slane %v979, 6
      %v1015 = vrot.slane %v979, 7
      %vm1016 = vcmp.eq.s32.totalorder %v920, %v979
      %vm1017 = vcmp.eq.s32.totalorder %v921, %v1009
      %vm1018 = vcmp.eq.s32.totalorder %v922, %v1010
      %vm1019 = vcmp.eq.s32.totalorder %v923, %v1011
      %vm1020 = vcmp.eq.s32.totalorder %v924, %v1012
      %vm1021 = vcmp.eq.s32.totalorder %v925, %v1013
      %vm1022 = vcmp.eq.s32.totalorder %v926, %v1014
      %vm1023 = vcmp.eq.s32.totalorder %v927, %v1015
      %v1024 = vsel %vm1016, 2147483648, %v920
      %v1025 = vsel %vm1017, 2147483648, %v921
      %v1026 = vsel %vm1018, 2147483648, %v922
      %v1027 = vsel %vm1019, 2147483648, %v923
      %v1028 = vsel %vm1020, 2147483648, %v924
      %v1029 = vsel %vm1021, 2147483648, %v925
      %v1030 = vsel %vm1022, 2147483648, %v926
      %v1031 = vsel %vm1023, 2147483648, %v927
      %v1032 = vrot.slane %v1008, 1
      %v1033 = vrot.slane %v1008, 2
      %v1034 = vrot.slane %v1008, 3
      %v1035 = vrot.slane %v1008, 4
      %v1036 = vrot.slane %v1008, 5
      %v1037 = vrot.slane %v1008, 6
      %v1038 = vrot.slane %v1008, 7
      %vm1039 = vcmp.eq.s32.totalorder %v943, %v1008
      %vm1040 = vcmp.eq.s32.totalorder %v944, %v1032
      %vm1041 = vcmp.eq.s32.totalorder %v945, %v1033
      %vm1042 = vcmp.eq.s32.totalorder %v946, %v1034
      %vm1043 = vcmp.eq.s32.totalorder %v947, %v1035
      %vm1044 = vcmp.eq.s32.totalorder %v948, %v1036
      %vm1045 = vcmp.eq.s32.totalorder %v949, %v1037
      %vm1046 = vcmp.eq.s32.totalorder %v950, %v1038
      %v1047 = vsel %vm1039, 2147483647, %v943
      %v1048 = vsel %vm1040, 2147483647, %v944
      %v1049 = vsel %vm1041, 2147483647, %v945
      %v1050 = vsel %vm1042, 2147483647, %v946
      %v1051 = vsel %vm1043, 2147483647, %v947
      %v1052 = vsel %vm1044, 2147483647, %v948
      %v1053 = vsel %vm1045, 2147483647, %v949
      %v1054 = vsel %vm1046, 2147483647, %v950
      %v1055 = vrot.slane %v1025, 7
      %v1056 = vsel %vm854, %v1055, %v1024
      %v1057 = vrot.slane %v1026, 6
      %v1058 = vsel %vm857, %v1057, %v1056
      %v1059 = vrot.slane %v1027, 5
      %v1060 = vsel %vm860, %v1059, %v1058
      %v1061 = vrot.slane %v1028, 4
      %v1062 = vsel %vm863, %v1061, %v1060
      %v1063 = vrot.slane %v1029, 3
      %v1064 = vsel %vm866, %v1063, %v1062
      %v1065 = vrot.slane %v1030, 2
      %v1066 = vsel %vm869, %v1065, %v1064
      %v1067 = vrot.slane %v1031, 1
      %v1068 = vsel %vm872, %v1067, %v1066
      %v1069 = vsel %vm874, %v1068, 2147483648
      %v1070 = vand.u32 %v1069, 65535
      %v1071 = vshra.s32 %v1069, 16
      %v1072 = vcvt.s32.f32 %v1070
      %v1073 = vcvt.s32.f32 %v1071
      %1074 = vmax.xlane.f32.xlu0 %v1073
      %v1075 = vpop.xlane.xlu0 %1074
      %vm1076 = vcmp.eq.f32.partialorder %v1073, %v1075
      %v1077 = vsel %vm1076, %v1072, -inf
      %1078 = vmax.xlane.f32.xlu0 %v1077
      %v1079 = vpop.xlane.xlu0 %1078
      %v1080 = vcvt.f32.s32 %v1079
      %v1081 = vcvt.f32.s32 %v1075
      %v1082 = vshll.u32 %v1081, 16
      %v1083 = vadd.s32 %v1082, %v1080
      %v1084 = vrot.slane %v1048, 7
      %v1085 = vsel %vm854, %v1084, %v1047
      %v1086 = vrot.slane %v1049, 6
      %v1087 = vsel %vm857, %v1086, %v1085
      %v1088 = vrot.slane %v1050, 5
      %v1089 = vsel %vm860, %v1088, %v1087
      %v1090 = vrot.slane %v1051, 4
      %v1091 = vsel %vm863, %v1090, %v1089
      %v1092 = vrot.slane %v1052, 3
      %v1093 = vsel %vm866, %v1092, %v1091
      %v1094 = vrot.slane %v1053, 2
      %v1095 = vsel %vm869, %v1094, %v1093
      %v1096 = vrot.slane %v1054, 1
      %v1097 = vsel %vm872, %v1096, %v1095
      %v1098 = vsel %vm874, %v1097, 2147483647
      %v1099 = vand.u32 %v1098, 65535
      %v1100 = vshra.s32 %v1098, 16
      %v1101 = vcvt.s32.f32 %v1099
      %v1102 = vcvt.s32.f32 %v1100
      %1103 = vmin.xlane.f32.xlu0 %v1102
      %v1104 = vpop.xlane.xlu0 %1103
      %vm1105 = vcmp.eq.f32.partialorder %v1102, %v1104
      %v1106 = vsel %vm1105, %v1101, inf
      %1107 = vmin.xlane.f32.xlu0 %v1106
      %v1108 = vpop.xlane.xlu0 %1107
      %v1109 = vcvt.f32.s32 %v1108
      %v1110 = vcvt.f32.s32 %v1104
      %v1111 = vshll.u32 %v1110, 16
      %v1112 = vadd.s32 %v1111, %v1109
      %v1113 = vrot.slane %v1083, 1
      %v1114 = vrot.slane %v1083, 2
      %v1115 = vrot.slane %v1083, 3
      %v1116 = vrot.slane %v1083, 4
      %v1117 = vrot.slane %v1083, 5
      %v1118 = vrot.slane %v1083, 6
      %v1119 = vrot.slane %v1083, 7
      %vm1120 = vcmp.eq.s32.totalorder %v1024, %v1083
      %vm1121 = vcmp.eq.s32.totalorder %v1025, %v1113
      %vm1122 = vcmp.eq.s32.totalorder %v1026, %v1114
      %vm1123 = vcmp.eq.s32.totalorder %v1027, %v1115
      %vm1124 = vcmp.eq.s32.totalorder %v1028, %v1116
      %vm1125 = vcmp.eq.s32.totalorder %v1029, %v1117
      %vm1126 = vcmp.eq.s32.totalorder %v1030, %v1118
      %vm1127 = vcmp.eq.s32.totalorder %v1031, %v1119
      %v1128 = vsel %vm1120, 2147483648, %v1024
      %v1129 = vsel %vm1121, 2147483648, %v1025
      %v1130 = vsel %vm1122, 2147483648, %v1026
      %v1131 = vsel %vm1123, 2147483648, %v1027
      %v1132 = vsel %vm1124, 2147483648, %v1028
      %v1133 = vsel %vm1125, 2147483648, %v1029
      %v1134 = vsel %vm1126, 2147483648, %v1030
      %v1135 = vsel %vm1127, 2147483648, %v1031
      %v1136 = vrot.slane %v1112, 1
      %v1137 = vrot.slane %v1112, 2
      %v1138 = vrot.slane %v1112, 3
      %v1139 = vrot.slane %v1112, 4
      %v1140 = vrot.slane %v1112, 5
      %v1141 = vrot.slane %v1112, 6
      %v1142 = vrot.slane %v1112, 7
      %vm1143 = vcmp.eq.s32.totalorder %v1047, %v1112
      %vm1144 = vcmp.eq.s32.totalorder %v1048, %v1136
      %vm1145 = vcmp.eq.s32.totalorder %v1049, %v1137
      %vm1146 = vcmp.eq.s32.totalorder %v1050, %v1138
      %vm1147 = vcmp.eq.s32.totalorder %v1051, %v1139
      %vm1148 = vcmp.eq.s32.totalorder %v1052, %v1140
      %vm1149 = vcmp.eq.s32.totalorder %v1053, %v1141
      %vm1150 = vcmp.eq.s32.totalorder %v1054, %v1142
      %v1151 = vsel %vm1143, 2147483647, %v1047
      %v1152 = vsel %vm1144, 2147483647, %v1048
      %v1153 = vsel %vm1145, 2147483647, %v1049
      %v1154 = vsel %vm1146, 2147483647, %v1050
      %v1155 = vsel %vm1147, 2147483647, %v1051
      %v1156 = vsel %vm1148, 2147483647, %v1052
      %v1157 = vsel %vm1149, 2147483647, %v1053
      %v1158 = vsel %vm1150, 2147483647, %v1054
      %v1159 = vrot.slane %v1129, 7
      %v1160 = vsel %vm854, %v1159, %v1128
      %v1161 = vrot.slane %v1130, 6
      %v1162 = vsel %vm857, %v1161, %v1160
      %v1163 = vrot.slane %v1131, 5
      %v1164 = vsel %vm860, %v1163, %v1162
      %v1165 = vrot.slane %v1132, 4
      %v1166 = vsel %vm863, %v1165, %v1164
      %v1167 = vrot.slane %v1133, 3
      %v1168 = vsel %vm866, %v1167, %v1166
      %v1169 = vrot.slane %v1134, 2
      %v1170 = vsel %vm869, %v1169, %v1168
      %v1171 = vrot.slane %v1135, 1
      %v1172 = vsel %vm872, %v1171, %v1170
      %v1173 = vsel %vm874, %v1172, 2147483648
      %v1174 = vand.u32 %v1173, 65535
      %v1175 = vshra.s32 %v1173, 16
      %v1176 = vcvt.s32.f32 %v1174
      %v1177 = vcvt.s32.f32 %v1175
      %1178 = vmax.xlane.f32.xlu0 %v1177
      %v1179 = vpop.xlane.xlu0 %1178
      %vm1180 = vcmp.eq.f32.partialorder %v1177, %v1179
      %v1181 = vsel %vm1180, %v1176, -inf
      %1182 = vmax.xlane.f32.xlu0 %v1181
      %v1183 = vpop.xlane.xlu0 %1182
      %v1184 = vcvt.f32.s32 %v1183
      %v1185 = vcvt.f32.s32 %v1179
      %v1186 = vshll.u32 %v1185, 16
      %v1187 = vadd.s32 %v1186, %v1184
      %v1188 = vrot.slane %v1152, 7
      %v1189 = vsel %vm854, %v1188, %v1151
      %v1190 = vrot.slane %v1153, 6
      %v1191 = vsel %vm857, %v1190, %v1189
      %v1192 = vrot.slane %v1154, 5
      %v1193 = vsel %vm860, %v1192, %v1191
      %v1194 = vrot.slane %v1155, 4
      %v1195 = vsel %vm863, %v1194, %v1193
      %v1196 = vrot.slane %v1156, 3
      %v1197 = vsel %vm866, %v1196, %v1195
      %v1198 = vrot.slane %v1157, 2
      %v1199 = vsel %vm869, %v1198, %v1197
      %v1200 = vrot.slane %v1158, 1
      %v1201 = vsel %vm872, %v1200, %v1199
      %v1202 = vsel %vm874, %v1201, 2147483647
      %v1203 = vand.u32 %v1202, 65535
      %v1204 = vshra.s32 %v1202, 16
      %v1205 = vcvt.s32.f32 %v1203
      %v1206 = vcvt.s32.f32 %v1204
      %1207 = vmin.xlane.f32.xlu0 %v1206
      %v1208 = vpop.xlane.xlu0 %1207
      %vm1209 = vcmp.eq.f32.partialorder %v1206, %v1208
      %v1210 = vsel %vm1209, %v1205, inf
      %1211 = vmin.xlane.f32.xlu0 %v1210
      %v1212 = vpop.xlane.xlu0 %1211
      %v1213 = vcvt.f32.s32 %v1212
      %v1214 = vcvt.f32.s32 %v1208
      %v1215 = vshll.u32 %v1214, 16
      %v1216 = vadd.s32 %v1215, %v1213
      %v1217 = vrot.slane %v1187, 1
      %v1218 = vrot.slane %v1187, 2
      %v1219 = vrot.slane %v1187, 3
      %v1220 = vrot.slane %v1187, 4
      %v1221 = vrot.slane %v1187, 5
      %v1222 = vrot.slane %v1187, 6
      %v1223 = vrot.slane %v1187, 7
      %vm1224 = vcmp.eq.s32.totalorder %v1128, %v1187
      %vm1225 = vcmp.eq.s32.totalorder %v1129, %v1217
      %vm1226 = vcmp.eq.s32.totalorder %v1130, %v1218
      %vm1227 = vcmp.eq.s32.totalorder %v1131, %v1219
      %vm1228 = vcmp.eq.s32.totalorder %v1132, %v1220
      %vm1229 = vcmp.eq.s32.totalorder %v1133, %v1221
      %vm1230 = vcmp.eq.s32.totalorder %v1134, %v1222
      %vm1231 = vcmp.eq.s32.totalorder %v1135, %v1223
      %v1232 = vsel %vm1224, 2147483648, %v1128
      %v1233 = vsel %vm1225, 2147483648, %v1129
      %v1234 = vsel %vm1226, 2147483648, %v1130
      %v1235 = vsel %vm1227, 2147483648, %v1131
      %v1236 = vsel %vm1228, 2147483648, %v1132
      %v1237 = vsel %vm1229, 2147483648, %v1133
      %v1238 = vsel %vm1230, 2147483648, %v1134
      %v1239 = vsel %vm1231, 2147483648, %v1135
      %v1240 = vrot.slane %v1216, 1
      %v1241 = vrot.slane %v1216, 2
      %v1242 = vrot.slane %v1216, 3
      %v1243 = vrot.slane %v1216, 4
      %v1244 = vrot.slane %v1216, 5
      %v1245 = vrot.slane %v1216, 6
      %v1246 = vrot.slane %v1216, 7
      %vm1247 = vcmp.eq.s32.totalorder %v1151, %v1216
      %vm1248 = vcmp.eq.s32.totalorder %v1152, %v1240
      %vm1249 = vcmp.eq.s32.totalorder %v1153, %v1241
      %vm1250 = vcmp.eq.s32.totalorder %v1154, %v1242
      %vm1251 = vcmp.eq.s32.totalorder %v1155, %v1243
      %vm1252 = vcmp.eq.s32.totalorder %v1156, %v1244
      %vm1253 = vcmp.eq.s32.totalorder %v1157, %v1245
      %vm1254 = vcmp.eq.s32.totalorder %v1158, %v1246
      %v1255 = vsel %vm1247, 2147483647, %v1151
      %v1256 = vsel %vm1248, 2147483647, %v1152
      %v1257 = vsel %vm1249, 2147483647, %v1153
      %v1258 = vsel %vm1250, 2147483647, %v1154
      %v1259 = vsel %vm1251, 2147483647, %v1155
      %v1260 = vsel %vm1252, 2147483647, %v1156
      %v1261 = vsel %vm1253, 2147483647, %v1157
      %v1262 = vsel %vm1254, 2147483647, %v1158
      %v1263 = vrot.slane %v1233, 7
      %v1264 = vsel %vm854, %v1263, %v1232
      %v1265 = vrot.slane %v1234, 6
      %v1266 = vsel %vm857, %v1265, %v1264
      %v1267 = vrot.slane %v1235, 5
      %v1268 = vsel %vm860, %v1267, %v1266
      %v1269 = vrot.slane %v1236, 4
      %v1270 = vsel %vm863, %v1269, %v1268
      %v1271 = vrot.slane %v1237, 3
      %v1272 = vsel %vm866, %v1271, %v1270
      %v1273 = vrot.slane %v1238, 2
      %v1274 = vsel %vm869, %v1273, %v1272
      %v1275 = vrot.slane %v1239, 1
      %v1276 = vsel %vm872, %v1275, %v1274
      %v1277 = vsel %vm874, %v1276, 2147483648
      %v1278 = vand.u32 %v1277, 65535
      %v1279 = vshra.s32 %v1277, 16
      %v1280 = vcvt.s32.f32 %v1278
      %v1281 = vcvt.s32.f32 %v1279
      %1282 = vmax.xlane.f32.xlu0 %v1281
      %v1283 = vpop.xlane.xlu0 %1282
      %vm1284 = vcmp.eq.f32.partialorder %v1281, %v1283
      %v1285 = vsel %vm1284, %v1280, -inf
      %1286 = vmax.xlane.f32.xlu0 %v1285
      %v1287 = vpop.xlane.xlu0 %1286
      %v1288 = vcvt.f32.s32 %v1287
      %v1289 = vcvt.f32.s32 %v1283
      %v1290 = vshll.u32 %v1289, 16
      %v1291 = vadd.s32 %v1290, %v1288
      %v1292 = vrot.slane %v1256, 7
      %v1293 = vsel %vm854, %v1292, %v1255
      %v1294 = vrot.slane %v1257, 6
      %v1295 = vsel %vm857, %v1294, %v1293
      %v1296 = vrot.slane %v1258, 5
      %v1297 = vsel %vm860, %v1296, %v1295
      %v1298 = vrot.slane %v1259, 4
      %v1299 = vsel %vm863, %v1298, %v1297
      %v1300 = vrot.slane %v1260, 3
      %v1301 = vsel %vm866, %v1300, %v1299
      %v1302 = vrot.slane %v1261, 2
      %v1303 = vsel %vm869, %v1302, %v1301
      %v1304 = vrot.slane %v1262, 1
      %v1305 = vsel %vm872, %v1304, %v1303
      %v1306 = vsel %vm874, %v1305, 2147483647
      %v1307 = vand.u32 %v1306, 65535
      %v1308 = vshra.s32 %v1306, 16
      %v1309 = vcvt.s32.f32 %v1307
      %v1310 = vcvt.s32.f32 %v1308
      %1311 = vmin.xlane.f32.xlu0 %v1310
      %v1312 = vpop.xlane.xlu0 %1311
      %vm1313 = vcmp.eq.f32.partialorder %v1310, %v1312
      %v1314 = vsel %vm1313, %v1309, inf
      %1315 = vmin.xlane.f32.xlu0 %v1314
      %v1316 = vpop.xlane.xlu0 %1315
      %v1317 = vcvt.f32.s32 %v1316
      %v1318 = vcvt.f32.s32 %v1312
      %v1319 = vshll.u32 %v1318, 16
      %v1320 = vadd.s32 %v1319, %v1317
      %vm1321 = vcmask 7168
      %v1322 = vsel %vm1321, %v889, %v979
      %vm1323 = vcmask 15360
      %v1324 = vsel %vm1323, %v1322, %v1083
      %vm1325 = vcmask 23552
      %v1326 = vsel %vm1325, %v1324, %v1187
      %vm1327 = vcmask 31744
      %v1328 = vsel %vm1327, %v1326, %v1291
      %vm1329 = vcmask 39936
      %v1330 = vsel %vm1329, %v1328, %v904
      %vm1331 = vcmask 48128
      %v1332 = vsel %vm1331, %v1330, %v1008
      %vm1333 = vcmask 56320
      %v1334 = vsel %vm1333, %v1332, %v1112
      %vm1335 = vcmask 64512
      %v1336 = vsel %vm1335, %v1334, %v1216
      %vm1337 = vcmask 72704
      %v1338 = vsel %vm1337, %v1336, %v1320
      %v1339 = vand.u32 %v1338, 4294967264
      %vm1340 = vcmp.lt.s32.totalorder %v1339, 0
      %v1341 = vxor.u32 %v1339, 2147483647
      %v1342 = vsel %vm1340, %v1341, %v1339
      %v1343 = vld [vmem:[%s2] sm:$0xff]
      %v1344 = vld [vmem:[%s2 + $0x8] sm:$0x3]
      %v1345 = vld [vmem:[%s2 + $0x10] sm:$0x1]
      %v1346 = vld [vmem:[%s2 + $0x18] sm:$0xff]
      %v1347 = vld [vmem:[%s2 + $0x20] sm:$0xff]
      %v1348 = vld [vmem:[%s2 + $0x28] sm:$0xff]
      %v1349 = vld [vmem:[%s2 + $0x30] sm:$0xff]
      %v1350 = vld [vmem:[%s2 + $0x38] sm:$0x1]
      %v1351 = vld [vmem:[%s2 + $0x40] sm:$0xff]
      %v1352 = vld [vmem:[%s2 + $0x48] sm:$0xff]
      %v1353 = vld [vmem:[%s2 + $0x50] sm:$0x1]
      %v1354 = vlaneseq
      %v1355 = vshrl.u32 %v1354, 7
      %v1356 = vsub.s32 0, %v1355
      %v1357 = vrot.slane %v1345, %v1356
      %vm1358 = vcmask 80896
      %v1359 = vsel %vm1358, %v1342, 0
      %vm1361 = vcmask 1041408
      %v1363 = vsel %vm1361, %v1344, 0
      %1365 = vmatprep.subr.mxu0 0.0
      %1366 = vmatpush1.msra.mxu0 %v1343
      %1367 = vmatprep.subr.mxu0 0.0
      %1368 = vmatpush1.msra.mxu0 %v1363
      %1369 = vmatprep.subr.mxu0 0.0
      %1370 = vmatpush1.msra.mxu0 0.0
      %1371 = vmatprep.subr.mxu0 0.0
      %1372 = vmatpush1.msra.mxu0 0.0
      %1373 = vmatprep.subr.mxu0 0.0
      %1374 = vmatpush1.msra.mxu0 0.0
      %1375 = vmatprep.subr.mxu0 0.0
      %1376 = vmatpush1.msra.mxu0 0.0
      %1377 = vmatprep.subr.mxu0 0.0
      %1378 = vmatpush1.msra.mxu0 0.0
      %1379 = vmatprep.subr.mxu0 0.0
      %1380 = vmatpush1.msra.mxu0 0.0
      %1381 = vmatprep.subr.mxu0 0.0
      %1382 = vmatpush1.msra.mxu0 0.0
      %1383 = vmatprep.subr.mxu0 0.0
      %1384 = vmatpush1.msra.mxu0 0.0
      %1385 = vmatprep.subr.mxu0 0.0
      %1386 = vmatpush1.msra.mxu0 0.0
      %1387 = vmatprep.subr.mxu0 0.0
      %1388 = vmatpush1.msra.mxu0 0.0
      %1389 = vmatprep.subr.mxu0 0.0
      %1390 = vmatpush1.msra.mxu0 0.0
      %1391 = vmatprep.subr.mxu0 0.0
      %1392 = vmatpush1.msra.mxu0 0.0
      %1393 = vmatprep.subr.mxu0 0.0
      %1394 = vmatpush1.msra.mxu0 0.0
      %1395 = vmatprep.subr.mxu0 0.0
      %1396 = vmatpush1.msra.mxu0 0.0
      %1397 = vmatprep.subr.mxu0 0.0
      %1398 = vmatpush1.msra.mxu0 0.0
      %1399 = vmatprep.subr.mxu0 0.0
      %1400 = vmatpush1.msra.mxu0 0.0
      %1401 = vmatprep.subr.mxu0 0.0
      %1402 = vmatpush1.msra.mxu0 0.0
      %1403 = vmatprep.subr.mxu0 0.0
      %1404 = vmatpush1.msra.mxu0 0.0
      %1405 = vmatprep.subr.mxu0 0.0
      %1406 = vmatpush1.msra.mxu0 0.0
      %1407 = vmatprep.subr.mxu0 0.0
      %1408 = vmatpush1.msra.mxu0 0.0
      %1409 = vmatprep.subr.mxu0 0.0
      %1410 = vmatpush1.msra.mxu0 0.0
      %1411 = vmatprep.subr.mxu0 0.0
      %1412 = vmatpush1.msra.mxu0 0.0
      %1413 = vmatprep.subr.mxu0 0.0
      %1414 = vmatpush1.msra.mxu0 0.0
      %1415 = vmatprep.subr.mxu0 0.0
      %1416 = vmatpush1.msra.mxu0 0.0
      %1417 = vmatprep.subr.mxu0 0.0
      %1418 = vmatpush1.msra.mxu0 0.0
      %1419 = vmatprep.subr.mxu0 0.0
      %1420 = vmatpush1.msra.mxu0 0.0
      %1421 = vmatprep.subr.mxu0 0.0
      %1422 = vmatpush1.msra.mxu0 0.0
      %1423 = vmatprep.subr.mxu0 0.0
      %1424 = vmatpush1.msra.mxu0 0.0
      %1425 = vmatprep.subr.mxu0 0.0
      %1426 = vmatpush1.msra.mxu0 0.0
      %1427 = vmatprep.subr.mxu0 0.0
      %1428 = vmatpush1.msra.mxu0 0.0
      %1429 = vmatprep.mubr.f32.mxu0 0.0
      %1430 = vmatmul.mubr.f32.gmra.mrb[0].mxu0 %v1359
      %v1431 = vpop.f32.mrb[0].mxu0
      %v1432 = vadd.f32 %v1357, %v1431
      %v1433 = vpop.f32.mrb[0].mxu0
      %1434 = vdwg.mxu0
      %v1435 = vxor.u32 %v1432, 2147483648
      %v1436 = vmul.f32 %v1435, 1.442695
      %v1437 = vpow.pop %v1436
      %v1438 = vadd.f32 %v1437, 1.0
      %v1439 = vrcp.pop %v1438
      %v1440 = vmul.f32 1.0, %v1439
      %v1441 = vlaneseq
      %v1442 = vshrl.u32 %v1441, 7
      %v1443 = vsub.s32 0, %v1442
      %v1444 = vrot.slane %v1350, %v1443
      %v1446 = vsel %vm874, %v1440, 0
      %1448 = vmatprep.subr.mxu0 0.0
      %1449 = vmatpush1.msra.mxu0 %v1346
      %1450 = vmatprep.subr.mxu0 0.0
      %1451 = vmatpush1.msra.mxu0 %v1347
      %1452 = vmatprep.subr.mxu0 0.0
      %1453 = vmatpush1.msra.mxu0 %v1348
      %1454 = vmatprep.subr.mxu0 0.0
      %1455 = vmatpush1.msra.mxu0 %v1349
      %1456 = vmatprep.subr.mxu0 0.0
      %1457 = vmatpush1.msra.mxu0 0.0
      %1458 = vmatprep.subr.mxu0 0.0
      %1459 = vmatpush1.msra.mxu0 0.0
      %1460 = vmatprep.subr.mxu0 0.0
      %1461 = vmatpush1.msra.mxu0 0.0
      %1462 = vmatprep.subr.mxu0 0.0
      %1463 = vmatpush1.msra.mxu0 0.0
      %1464 = vmatprep.subr.mxu0 0.0
      %1465 = vmatpush1.msra.mxu0 0.0
      %1466 = vmatprep.subr.mxu0 0.0
      %1467 = vmatpush1.msra.mxu0 0.0
      %1468 = vmatprep.subr.mxu0 0.0
      %1469 = vmatpush1.msra.mxu0 0.0
      %1470 = vmatprep.subr.mxu0 0.0
      %1471 = vmatpush1.msra.mxu0 0.0
      %1472 = vmatprep.subr.mxu0 0.0
      %1473 = vmatpush1.msra.mxu0 0.0
      %1474 = vmatprep.subr.mxu0 0.0
      %1475 = vmatpush1.msra.mxu0 0.0
      %1476 = vmatprep.subr.mxu0 0.0
      %1477 = vmatpush1.msra.mxu0 0.0
      %1478 = vmatprep.subr.mxu0 0.0
      %1479 = vmatpush1.msra.mxu0 0.0
      %1480 = vmatprep.subr.mxu0 0.0
      %1481 = vmatpush1.msra.mxu0 0.0
      %1482 = vmatprep.subr.mxu0 0.0
      %1483 = vmatpush1.msra.mxu0 0.0
      %1484 = vmatprep.subr.mxu0 0.0
      %1485 = vmatpush1.msra.mxu0 0.0
      %1486 = vmatprep.subr.mxu0 0.0
      %1487 = vmatpush1.msra.mxu0 0.0
      %1488 = vmatprep.subr.mxu0 0.0
      %1489 = vmatpush1.msra.mxu0 0.0
      %1490 = vmatprep.subr.mxu0 0.0
      %1491 = vmatpush1.msra.mxu0 0.0
      %1492 = vmatprep.subr.mxu0 0.0
      %1493 = vmatpush1.msra.mxu0 0.0
      %1494 = vmatprep.subr.mxu0 0.0
      %1495 = vmatpush1.msra.mxu0 0.0
      %1496 = vmatprep.subr.mxu0 0.0
      %1497 = vmatpush1.msra.mxu0 0.0
      %1498 = vmatprep.subr.mxu0 0.0
      %1499 = vmatpush1.msra.mxu0 0.0
      %1500 = vmatprep.subr.mxu0 0.0
      %1501 = vmatpush1.msra.mxu0 0.0
      %1502 = vmatprep.subr.mxu0 0.0
      %1503 = vmatpush1.msra.mxu0 0.0
      %1504 = vmatprep.subr.mxu0 0.0
      %1505 = vmatpush1.msra.mxu0 0.0
      %1506 = vmatprep.subr.mxu0 0.0
      %1507 = vmatpush1.msra.mxu0 0.0
      %1508 = vmatprep.subr.mxu0 0.0
      %1509 = vmatpush1.msra.mxu0 0.0
      %1510 = vmatprep.subr.mxu0 0.0
      %1511 = vmatpush1.msra.mxu0 0.0
      %1512 = vmatprep.mubr.f32.mxu0 0.0
      %1513 = vmatmul.mubr.f32.gmra.mrb[0].mxu0 %v1446
      %v1514 = vpop.f32.mrb[0].mxu0
      %v1515 = vadd.f32 %v1444, %v1514
      %v1516 = vpop.f32.mrb[0].mxu0
      %1517 = vdwg.mxu0
      %v1518 = vxor.u32 %v1515, 2147483648
      %v1519 = vmul.f32 %v1518, 1.442695
      %v1520 = vpow.pop %v1519
      %v1521 = vadd.f32 %v1520, 1.0
      %v1522 = vrcp.pop %v1521
      %v1523 = vmul.f32 1.0, %v1522
      %v1524 = vlaneseq
      %v1525 = vshrl.u32 %v1524, 7
      %v1526 = vsub.s32 0, %v1525
      %v1527 = vrot.slane %v1353, %v1526
      %vm1528 = vcmask 130048
      %v1530 = vsel %vm1528, %v1523, 0
      %1532 = vmatprep.subr.mxu0 0.0
      %1533 = vmatpush1.msra.mxu0 %v1351
      %1534 = vmatprep.subr.mxu0 0.0
      %1535 = vmatpush1.msra.mxu0 %v1352
      %1536 = vmatprep.subr.mxu0 0.0
      %1537 = vmatpush1.msra.mxu0 0.0
      %1538 = vmatprep.subr.mxu0 0.0
      %1539 = vmatpush1.msra.mxu0 0.0
      %1540 = vmatprep.subr.mxu0 0.0
      %1541 = vmatpush1.msra.mxu0 0.0
      %1542 = vmatprep.subr.mxu0 0.0
      %1543 = vmatpush1.msra.mxu0 0.0
      %1544 = vmatprep.subr.mxu0 0.0
      %1545 = vmatpush1.msra.mxu0 0.0
      %1546 = vmatprep.subr.mxu0 0.0
      %1547 = vmatpush1.msra.mxu0 0.0
      %1548 = vmatprep.subr.mxu0 0.0
      %1549 = vmatpush1.msra.mxu0 0.0
      %1550 = vmatprep.subr.mxu0 0.0
      %1551 = vmatpush1.msra.mxu0 0.0
      %1552 = vmatprep.subr.mxu0 0.0
      %1553 = vmatpush1.msra.mxu0 0.0
      %1554 = vmatprep.subr.mxu0 0.0
      %1555 = vmatpush1.msra.mxu0 0.0
      %1556 = vmatprep.subr.mxu0 0.0
      %1557 = vmatpush1.msra.mxu0 0.0
      %1558 = vmatprep.subr.mxu0 0.0
      %1559 = vmatpush1.msra.mxu0 0.0
      %1560 = vmatprep.subr.mxu0 0.0
      %1561 = vmatpush1.msra.mxu0 0.0
      %1562 = vmatprep.subr.mxu0 0.0
      %1563 = vmatpush1.msra.mxu0 0.0
      %1564 = vmatprep.subr.mxu0 0.0
      %1565 = vmatpush1.msra.mxu0 0.0
      %1566 = vmatprep.subr.mxu0 0.0
      %1567 = vmatpush1.msra.mxu0 0.0
      %1568 = vmatprep.subr.mxu0 0.0
      %1569 = vmatpush1.msra.mxu0 0.0
      %1570 = vmatprep.subr.mxu0 0.0
      %1571 = vmatpush1.msra.mxu0 0.0
      %1572 = vmatprep.subr.mxu0 0.0
      %1573 = vmatpush1.msra.mxu0 0.0
      %1574 = vmatprep.subr.mxu0 0.0
      %1575 = vmatpush1.msra.mxu0 0.0
      %1576 = vmatprep.subr.mxu0 0.0
      %1577 = vmatpush1.msra.mxu0 0.0
      %1578 = vmatprep.subr.mxu0 0.0
      %1579 = vmatpush1.msra.mxu0 0.0
      %1580 = vmatprep.subr.mxu0 0.0
      %1581 = vmatpush1.msra.mxu0 0.0
      %1582 = vmatprep.subr.mxu0 0.0
      %1583 = vmatpush1.msra.mxu0 0.0
      %1584 = vmatprep.subr.mxu0 0.0
      %1585 = vmatpush1.msra.mxu0 0.0
      %1586 = vmatprep.subr.mxu0 0.0
      %1587 = vmatpush1.msra.mxu0 0.0
      %1588 = vmatprep.subr.mxu0 0.0
      %1589 = vmatpush1.msra.mxu0 0.0
      %1590 = vmatprep.subr.mxu0 0.0
      %1591 = vmatpush1.msra.mxu0 0.0
      %1592 = vmatprep.subr.mxu0 0.0
      %1593 = vmatpush1.msra.mxu0 0.0
      %1594 = vmatprep.subr.mxu0 0.0
      %1595 = vmatpush1.msra.mxu0 0.0
      %1596 = vmatprep.mubr.f32.mxu0 0.0
      %1597 = vmatmul.mubr.f32.gmra.mrb[0].mxu0 %v1530
      %v1598 = vpop.f32.mrb[0].mxu0
      %v1599 = vadd.f32 %v1527, %v1598
      %v1600 = vpop.f32.mrb[0].mxu0
      %1601 = vdwg.mxu0
      %v1602 = vxor.u32 %v1599, 2147483648
      %v1603 = vmul.f32 %v1602, 1.442695
      %v1604 = vpow.pop %v1603
      %v1605 = vadd.f32 %v1604, 1.0
      %v1606 = vrcp.pop %v1605
      %v1607 = vmul.f32 1.0, %v1606
      %1608 = vst.msk [vmem:[%s173] sm:$0xff] %vm1321, %v1607
      %p1609 = scmp.lt.s32.totalorder %s14, 1
      %s1610 = scalar_select %p1609, %s14, 1
      %s1611 = smul.addr %s1610, 8
      %s1612 = scalar_lea.vmem %s3, %s1611
      // Predicated region
      $region33: #{tpu_custom_call.1} parent=31 // pred_check
        %p1613 = pneg %p100
      $region34: #{tpu_custom_call.1} parent=31 // pred_check_branch
        %1615 = sbr.rel (%p1613) target = $region36
      $region35: #{tpu_custom_call.1} parent=31 // pred_region
        _
      $region36: #{tpu_custom_call.1} parent=31 // pred_fallthru
        _
    $region32: #{tpu_custom_call.1} parent=5 // pred_fallthru
      _
    %p1616 = scmp.le.s32.totalorder 2, %s9
    // Predicated region
    $region37: #{tpu_custom_call.1} parent=5 // pred_check
      %p1617 = pneg %p1616
    $region38: #{tpu_custom_call.1} parent=5 // pred_check_branch
      %1619 = sbr.rel (%p1617) target = $region40
    $region39: #{tpu_custom_call.1} parent=5 // pred_region
      %s1620 = ssub.s32 %s9, 2
      // Predicated region
      $region41: #{tpu_custom_call.1} parent=39 // pred_check
        %p1621 = pneg %p106
      $region42: #{tpu_custom_call.1} parent=39 // pred_check_branch
        %1623 = sbr.rel (%p1621) target = $region44
      $region43: #{tpu_custom_call.1} parent=39 // pred_region
        %p1624 = scmp.lt.s32.totalorder %s15, 1
        %s1625 = scalar_select %p1624, %s15, 1
        %s1626 = smul.addr %s1625, 8
        %s1627 = scalar_lea.vmem %s3, %s1626
      $region44: #{tpu_custom_call.1} parent=39 // pred_fallthru
        _
    $region40: #{tpu_custom_call.1} parent=5 // pred_fallthru
      _
  $region6: #{tpu_custom_call.1} parent=0 // loop_footer
    %s13 = sadd.s32 1, %s9
  $region7: #{tpu_custom_call.1} parent=0 // loop_footer_branch
    %8 = sbr.rel target = $region3
  $region8: #{tpu_custom_call.1} parent=0 // loop_exit
    _

</llo_original>
